<compile_context>
chip_gen: v7x
topology: tpu7x:2x2x1
jax: 0.10.0
libtpu: 0.0.40
codegen_flags: <defaults>
</compile_context>

<pallas_src>
import functools

import jax
import jax.numpy as jnp
from jax import lax
from jax.experimental import pallas as pl
from jax.experimental.pallas import tpu as pltpu

LN_EPS = 1e-12
_INV_SQRT2 = 0.7071067811865476


def _round_up(x, m):
    return ((x + m - 1) // m) * m


def _gelu_exact(x):
    # exact (erf-based) GELU, matching torch.nn.functional.gelu default
    return 0.5 * x * (1.0 + lax.erf(x * _INV_SQRT2))


def _tpu_info():
    """(device_kind lowercase, vmem_capacity_bytes) with safe fallbacks."""
    kind = ""
    try:
        kind = jax.devices()[0].device_kind.lower()
    except Exception:
        pass
    vmem = 64 * 1024 * 1024 if "v7" in kind else 128 * 1024 * 1024
    try:
        vmem = int(pltpu.get_tpu_info().vmem_capacity_bytes)
    except Exception:
        pass
    return kind, vmem


def _default_tiles(kind):
    # Decoder step arithmetic intensity ~ tile_m FLOPs per decoder-weight byte;
    # tile_m must exceed the chip's compute/BW ratio to be MXU-bound.
    if "v5 lite" in kind or "v5e" in kind or "v5lite" in kind:
        return 256, 2048    # v5e: output-stream bound; bigger tiles just burn VMEM
    if "v6" in kind or "trillium" in kind:
        return 1024, 2048   # v6e needs ~650 FLOPs/byte to be MXU-bound
    if "v7" in kind:
        return 512, 2048    # v7x: ~310 FLOPs/byte, only 64 MiB VMEM per TC
    return 512, 2048


# ---------------------------------------------------------------------------
# One-time parameter preparation (call OUTSIDE jit / the traced forward).
# Casts matmul weights to compute_dtype and pads the decoder weight/bias vocab
# axis to a tile multiple so the traced forward does no extra HBM passes over
# the largest weight.
# ---------------------------------------------------------------------------
def prepare_params(params, *, tile_v=2048, compute_dtype=jnp.bfloat16):
    p = dict(params)
    v = params["decoder_w_t"].shape[1]
    tile_v = max(128, _round_up(tile_v, 128))
    tv = min(tile_v, _round_up(v, 128))
    v_pad = _round_up(v, tv)
    wdec = params["decoder_w_t"].astype(compute_dtype)
    db = params["decoder_bias"]
    if v_pad != v:
        wdec = jnp.pad(wdec, ((0, 0), (0, v_pad - v)))
        db = jnp.pad(db, ((0, 0), (0, v_pad - v)))
    p["decoder_w_t"] = wdec
    p["decoder_bias"] = db
    p["dense_w_t"] = params["dense_w_t"].astype(compute_dtype)
    return p


# ---------------------------------------------------------------------------
# Kernel 1: BertLMPredictionHead
#   dense(H->H) -> gelu -> LayerNorm(H) -> decoder(H->V, no bias) + bias[V]
# Grid = (token tiles [parallel], vocab tiles [arbitrary, innermost]).
# The transform is computed once per token tile (first vocab tile) and cached
# in a compute_dtype VMEM scratch, then reused for every vocab tile.
# ---------------------------------------------------------------------------
def mlm_head_kernel(x_ref, wd_ref, bd_ref, g_ref, beta_ref,
                    wdec_ref, dbias_ref, out_ref, h_ref, *, compute_dtype):
    @pl.when(pl.program_id(1) == 0)
    def _():
        x = x_ref[...].astype(compute_dtype)
        h = jnp.dot(x, wd_ref[...], preferred_element_type=jnp.float32)
        h = h + bd_ref[...]
        h = _gelu_exact(h)
        # LayerNorm over the feature axis, eps = 1e-12 (PyTorch BERT default)
        mean = jnp.mean(h, axis=-1, keepdims=True)
        var = jnp.mean(jnp.square(h - mean), axis=-1, keepdims=True)
        h = (h - mean) * lax.rsqrt(var + LN_EPS)
        # cached in compute_dtype: no per-vocab-tile cast before the decoder matmul
        h_ref[...] = (h * g_ref[...] + beta_ref[...]).astype(compute_dtype)

    logits = jnp.dot(h_ref[...], wdec_ref[...],
                     preferred_element_type=jnp.float32)
    out_ref[...] = (logits + dbias_ref[...]).astype(out_ref.dtype)


def mlm_prediction_head(seq_out_2d, wd_t, bd, gamma, beta, wdec_t, dec_bias,
                        *, vocab_size=None, tile_m=None, tile_v=None,
                        compute_dtype=jnp.bfloat16, out_dtype=jnp.bfloat16):
    n, hdim = seq_out_2d.shape
    v_stored = wdec_t.shape[1]
    v = v_stored if vocab_size is None else vocab_size

    kind, vmem_cap = _tpu_info()
    d_tm, d_tv = _default_tiles(kind)
    tile_m = d_tm if tile_m is None else tile_m
    tile_v = d_tv if tile_v is None else tile_v

    tile_m = max(8, _round_up(tile_m, 8))
    tile_v = max(128, _round_up(tile_v, 128))
    tm = min(tile_m, _round_up(n, 8))
    # Megacore: guarantee >= 2 token tiles so both TensorCores (v7x) get work.
    if n >= 16:
        tm = min(tm, _round_up((n + 1) // 2, 8))
    tv = min(tile_v, _round_up(v_stored, 128))

    def vmem_est(tm_, tv_):
        c = jnp.dtype(compute_dtype).itemsize
        o = jnp.dtype(out_dtype).itemsize
        return (2 * tm_ * hdim * seq_out_2d.dtype.itemsize  # x tiles (double-buffered)
                + 2 * hdim * hdim * jnp.dtype(wd_t.dtype).itemsize  # dense weight
                + 8 * hdim * 4 + 2 * tv_ * 4                # biases / LN params
                + 2 * hdim * tv_ * c                        # decoder weight tile
                + 2 * tm_ * tv_ * o                         # output tile
                + tm_ * hdim * c)                           # cached transform scratch

    # Shrink tm until the estimate fits comfortably inside VMEM.
    while tm > 64 and vmem_est(tm, tv) > 0.7 * vmem_cap:
        tm = max(64, _round_up(tm // 2, 8))

    n_pad = _round_up(n, tm)
    v_pad = _round_up(v_stored, tv)

    x = seq_out_2d
    if n_pad != n:
        x = jnp.pad(x, ((0, n_pad - n), (0, 0)))

    # Weights are expected to be pre-cast / pre-padded once by prepare_params();
    # the fallbacks below only fire if the caller skipped that step.
    wd = wd_t if wd_t.dtype == compute_dtype else wd_t.astype(compute_dtype)
    wdec = wdec_t if wdec_t.dtype == compute_dtype else wdec_t.astype(compute_dtype)
    db = dec_bias
    if v_pad != v_stored:
        wdec = jnp.pad(wdec, ((0, 0), (0, v_pad - v_stored)))
        db = jnp.pad(db, ((0, 0), (0, v_pad - v_stored)))

    grid = (n_pad // tm, v_pad // tv)  # vocab innermost -> cached transform reused

    vmem_limit = int(min(max(int(1.5 * vmem_est(tm, tv)), 32 * 1024 * 1024),
                         int(0.8 * vmem_cap)))

    cost = pl.CostEstimate(
        flops=2 * n * hdim * (hdim + v),
        transcendentals=n * hdim,
        bytes_accessed=(n * hdim * x.dtype.itemsize
                        + hdim * hdim * jnp.dtype(wd.dtype).itemsize
                        + (n_pad // tm) * hdim * v_pad * jnp.dtype(wdec.dtype).itemsize
                        + n_pad * v_pad * jnp.dtype(out_dtype).itemsize))

    out = pl.pallas_call(
        functools.partial(mlm_head_kernel, compute_dtype=compute_dtype),
        out_shape=jax.ShapeDtypeStruct((n_pad, v_pad), out_dtype),
        grid_spec=pltpu.PrefetchScalarGridSpec(
            num_scalar_prefetch=0,
            grid=grid,
            in_specs=[
                pl.BlockSpec((tm, hdim), lambda i, j: (i, 0)),     # x tile
                pl.BlockSpec((hdim, hdim), lambda i, j: (0, 0)),   # dense weight (H,H)
                pl.BlockSpec((1, hdim), lambda i, j: (0, 0)),      # dense bias
                pl.BlockSpec((1, hdim), lambda i, j: (0, 0)),      # LN gamma
                pl.BlockSpec((1, hdim), lambda i, j: (0, 0)),      # LN beta
                pl.BlockSpec((hdim, tv), lambda i, j: (0, j)),     # decoder weight tile
                pl.BlockSpec((1, tv), lambda i, j: (0, j)),        # decoder bias tile
            ],
            out_specs=pl.BlockSpec((tm, tv), lambda i, j: (i, j)),
            scratch_shapes=[pltpu.VMEM((tm, hdim), compute_dtype)],  # cached transform
        ),
        compiler_params=pltpu.CompilerParams(
            dimension_semantics=("parallel", "arbitrary"),
            vmem_limit_bytes=vmem_limit),
        cost_estimate=cost,
    )(x, wd, bd, gamma, beta, wdec, db)

    if n_pad != n or v_pad != v:
        # Only fires for non-tile-divisible shapes.  In production keep V padded
        # end-to-end and mask in the loss to avoid this extra N x V copy.
        out = out[:n, :v]
    return out


# ---------------------------------------------------------------------------
# Kernel 2: seq_relationship = Linear(H->512) -> ReLU -> Linear(512->2)
# Tiny problem; single invocation, whole arrays resident in VMEM.
# ---------------------------------------------------------------------------
def seq_rel_kernel(p_ref, w1_ref, b1_ref, w2_ref, b2_ref, out_ref):
    h = jnp.dot(p_ref[...], w1_ref[...], preferred_element_type=jnp.float32)
    h = jnp.maximum(h + b1_ref[...], 0.0)
    out = jnp.dot(h, w2_ref[...], preferred_element_type=jnp.float32)
    out_ref[...] = (out + b2_ref[...]).astype(out_ref.dtype)


def seq_relationship_head(pooled, w1_t, b1, w2_t, b2):
    b = pooled.shape[0]
    n_cls = w2_t.shape[1]
    return pl.pallas_call(
        seq_rel_kernel,
        out_shape=jax.ShapeDtypeStruct((b, n_cls), pooled.dtype),
    )(pooled, w1_t, b1, w2_t, b2)


# ---------------------------------------------------------------------------
# Full module forward
# ---------------------------------------------------------------------------
def vlm_pretraining_head(sequence_output, pooled_output, params, *,
                         vocab_size=None, tile_m=None, tile_v=None,
                         compute_dtype=jnp.bfloat16, out_dtype=jnp.bfloat16):
    b, s, hdim = sequence_output.shape
    seq2d = sequence_output.reshape(b * s, hdim)
    pred2d = mlm_prediction_head(
        seq2d,
        params["dense_w_t"], params["dense_b"],
        params["ln_gamma"], params["ln_beta"],
        params["decoder_w_t"], params["decoder_bias"],
        vocab_size=vocab_size, tile_m=tile_m, tile_v=tile_v,
        compute_dtype=compute_dtype, out_dtype=out_dtype)
    prediction_scores = pred2d.reshape(b, s, -1)
    seq_relationship_score = seq_relationship_head(
        pooled_output,
        params["rel1_w_t"], params["rel1_b"],
        params["rel2_w_t"], params["rel2_b"])
    return prediction_scores, seq_relationship_score


# ---------------------------------------------------------------------------
# Pure-JAX reference (numerics matched: bf16 matmul operands, f32 accumulation)
# ---------------------------------------------------------------------------
def _reference(sequence_output, pooled_output, p, compute_dtype=jnp.bfloat16):
    cdt = compute_dtype
    h = jnp.dot(sequence_output.astype(cdt), p["dense_w_t"].astype(cdt),
                preferred_element_type=jnp.float32)
    h = h + p["dense_b"][0]
    h = _gelu_exact(h)
    mean = jnp.mean(h, axis=-1, keepdims=True)
    var = jnp.mean((h - mean) ** 2, axis=-1, keepdims=True)
    h = (h - mean) * lax.rsqrt(var + LN_EPS)
    h = h * p["ln_gamma"][0] + p["ln_beta"][0]
    pred = jnp.dot(h.astype(cdt), p["decoder_w_t"].astype(cdt),
                   preferred_element_type=jnp.float32) + p["decoder_bias"][0]
    r = jnp.maximum(pooled_output @ p["rel1_w_t"] + p["rel1_b"][0], 0.0)
    rel = r @ p["rel2_w_t"] + p["rel2_b"][0]
    return pred, rel


if __name__ == "__main__":
    # Small config chosen to exercise padding + multi-tile paths:
    #   N = B*S = 18 tokens (padded to 32 with tile_m=16 -> 2 M tiles)
    #   V = 300 vocab (padded to 384 with tile_v=128 -> 3 V tiles)
    B, S, H, V = 2, 9, 32, 300
    REL_HIDDEN, N_CLS = 512, 2

    key = jax.random.PRNGKey(0)
    ks = jax.random.split(key, 8)

    raw_params = {
        # BertPredictionHeadTransform.dense (H->H), stored transposed [in, out]
        "dense_w_t": 0.02 * jax.random.normal(ks[0], (H, H), jnp.float32),
        "dense_b": 0.02 * jax.random.normal(ks[1], (1, H), jnp.float32),
        # LayerNorm params (PyTorch init: gamma=1, beta=0)
        "ln_gamma": jnp.ones((1, H), jnp.float32),
        "ln_beta": jnp.zeros((1, H), jnp.float32),
        # decoder: Linear(H -> V, bias=False) + separate bias Parameter (zeros)
        "decoder_w_t": 0.02 * jax.random.normal(ks[2], (H, V), jnp.float32),
        "decoder_bias": jnp.zeros((1, V), jnp.float32),
        # seq_relationship: Linear(H->512), ReLU, Linear(512->2)
        "rel1_w_t": 0.02 * jax.random.normal(ks[3], (H, REL_HIDDEN), jnp.float32),
        "rel1_b": 0.02 * jax.random.normal(ks[4], (1, REL_HIDDEN), jnp.float32),
        "rel2_w_t": 0.02 * jax.random.normal(ks[5], (REL_HIDDEN, N_CLS), jnp.float32),
        "rel2_b": 0.02 * jax.random.normal(ks[6], (1, N_CLS), jnp.float32),
    }

    # One-time (outside jit) weight prep: bf16 cast + vocab padding of the decoder.
    params = prepare_params(raw_params, tile_v=128, compute_dtype=jnp.bfloat16)

    sequence_output = jax.random.normal(ks[7], (B, S, H), jnp.float32)
    pooled_output = sequence_output[:, 0, :]  # standard BERT pooling input proxy

    fwd = jax.jit(functools.partial(
        vlm_pretraining_head, vocab_size=V, tile_m=16, tile_v=128,
        compute_dtype=jnp.bfloat16, out_dtype=jnp.bfloat16))
    pred, rel = fwd(sequence_output, pooled_output, params)
    jax.block_until_ready((pred, rel))

    # silent correctness check against plain-JAX reference (matched numerics;
    # kernel logits are bf16 -> slightly looser tolerance)
    ref_pred, ref_rel = _reference(sequence_output, pooled_output, raw_params,
                                   compute_dtype=jnp.bfloat16)
    assert pred.shape == (B, S, V) and rel.shape == (B, N_CLS)
    assert jnp.allclose(pred.astype(jnp.float32), ref_pred, atol=1e-2, rtol=1e-2)
    assert jnp.allclose(rel, ref_rel, atol=1e-4, rtol=1e-4)

    print("KERNEL_OK")
</pallas_src>

<mosaic_0001>
module attributes {stable_mosaic.version = 11 : i64} {
  func.func @seq_rel_kernel(%arg0: memref<2x32xf32, #tpu.memory_space<vmem>>, %arg1: memref<32x512xf32, #tpu.memory_space<vmem>>, %arg2: memref<1x512xf32, #tpu.memory_space<vmem>>, %arg3: memref<512x2xf32, #tpu.memory_space<vmem>>, %arg4: memref<1x2xf32, #tpu.memory_space<vmem>>, %arg5: memref<2x2xf32, #tpu.memory_space<vmem>>) attributes {dimension_semantics = [], scalar_prefetch = 0 : i64, scratch_operands = 0 : i64, tpu.core_type = #tpu.core_type<tc>} {
    %c0 = arith.constant 0 : index
    %c0_0 = arith.constant 0 : index
    %0 = vector.load %arg0[%c0, %c0_0] : memref<2x32xf32, #tpu.memory_space<vmem>>, vector<2x32xf32>
    %c0_1 = arith.constant 0 : index
    %c0_2 = arith.constant 0 : index
    %1 = vector.load %arg1[%c0_1, %c0_2] : memref<32x512xf32, #tpu.memory_space<vmem>>, vector<32x512xf32>
    %cst = arith.constant dense<0.000000e+00> : vector<2x512xf32>
    %2 = tpu.matmul %0, %1, %cst {dimension_numbers = #tpu.dot_dimension_numbers<[1], [0], [0], [1], [0, 0, 1, 1], [], []>} : vector<2x32xf32>, vector<32x512xf32>, vector<2x512xf32> -> vector<2x512xf32>
    %c0_3 = arith.constant 0 : index
    %c0_4 = arith.constant 0 : index
    %3 = vector.load %arg2[%c0_3, %c0_4] : memref<1x512xf32, #tpu.memory_space<vmem>>, vector<1x512xf32>
    %4 = vector.broadcast %3 : vector<1x512xf32> to vector<2x512xf32>
    %5 = arith.addf %2, %4 : vector<2x512xf32>
    %cst_5 = arith.constant 0.000000e+00 : f32
    %6 = vector.broadcast %cst_5 : f32 to vector<2x512xf32>
    %7 = arith.maximumf %5, %6 : vector<2x512xf32>
    %c0_6 = arith.constant 0 : index
    %c0_7 = arith.constant 0 : index
    %8 = vector.load %arg3[%c0_6, %c0_7] : memref<512x2xf32, #tpu.memory_space<vmem>>, vector<512x2xf32>
    %cst_8 = arith.constant dense<0.000000e+00> : vector<2x2xf32>
    %9 = tpu.matmul %7, %8, %cst_8 {dimension_numbers = #tpu.dot_dimension_numbers<[1], [0], [0], [1], [0, 0, 1, 1], [], []>} : vector<2x512xf32>, vector<512x2xf32>, vector<2x2xf32> -> vector<2x2xf32>
    %c0_9 = arith.constant 0 : index
    %c0_10 = arith.constant 0 : index
    %10 = vector.load %arg4[%c0_9, %c0_10] : memref<1x2xf32, #tpu.memory_space<vmem>>, vector<1x2xf32>
    %11 = vector.broadcast %10 : vector<1x2xf32> to vector<2x2xf32>
    %12 = arith.addf %9, %11 : vector<2x2xf32>
    %c0_11 = arith.constant 0 : index
    %c0_12 = arith.constant 0 : index
    %13 = vector.load %arg5[%c0_11, %c0_12] : memref<2x2xf32, #tpu.memory_space<vmem>>, vector<2x2xf32>
    tpu.vector_store %arg5[%c0_11, %c0_12], %12 {strides = array<i32>} : memref<2x2xf32, #tpu.memory_space<vmem>>, vector<2x2xf32>,
    return
  }
}

module attributes {stable_mosaic.version = 11 : i64} {
  func.func @mlm_head_kernel(%arg0: i32, %arg1: i32, %arg2: memref<16x32xf32, #tpu.memory_space<vmem>>, %arg3: memref<32x32xbf16, #tpu.memory_space<vmem>>, %arg4: memref<1x32xf32, #tpu.memory_space<vmem>>, %arg5: memref<1x32xf32, #tpu.memory_space<vmem>>, %arg6: memref<1x32xf32, #tpu.memory_space<vmem>>, %arg7: memref<32x128xbf16, #tpu.memory_space<vmem>>, %arg8: memref<1x128xf32, #tpu.memory_space<vmem>>, %arg9: memref<16x128xbf16, #tpu.memory_space<vmem>>, %arg10: memref<16x32xbf16, #tpu.memory_space<vmem>>) attributes {dimension_semantics = [#tpu.dimension_semantics<parallel>, #tpu.dimension_semantics<arbitrary>], iteration_bounds = array<i64: 2, 3>, scalar_prefetch = 0 : i64, scratch_operands = 1 : i64, tpu.core_type = #tpu.core_type<tc>, window_params = [{transform_indices = @transform_0, window_bounds = array<i64: 16, 32>}, {pipeline_mode = #tpu.pipeline_mode<synchronous>, transform_indices = @transform_1, window_bounds = array<i64: 32, 32>}, {pipeline_mode = #tpu.pipeline_mode<synchronous>, transform_indices = @transform_2, window_bounds = array<i64: 1, 32>}, {pipeline_mode = #tpu.pipeline_mode<synchronous>, transform_indices = @transform_3, window_bounds = array<i64: 1, 32>}, {pipeline_mode = #tpu.pipeline_mode<synchronous>, transform_indices = @transform_4, window_bounds = array<i64: 1, 32>}, {transform_indices = @transform_5, window_bounds = array<i64: 32, 128>}, {transform_indices = @transform_6, window_bounds = array<i64: 1, 128>}, {transform_indices = @transform_7, window_bounds = array<i64: 16, 128>}]} {
    %c0_i32 = arith.constant 0 : i32
    %0 = arith.cmpi eq, %arg1, %c0_i32 : i32
    %1 = arith.extui %0 : i1 to i32
    %c0_i32_0 = arith.constant 0 : i32
    %2 = arith.cmpi ne, %1, %c0_i32_0 : i32
    scf.if %2 {
      %c0_8 = arith.constant 0 : index
      %c0_9 = arith.constant 0 : index
      %11 = vector.load %arg2[%c0_8, %c0_9] : memref<16x32xf32, #tpu.memory_space<vmem>>, vector<16x32xf32>
      %12 = arith.truncf %11 : vector<16x32xf32> to vector<16x32xbf16>
      %c0_10 = arith.constant 0 : index
      %c0_11 = arith.constant 0 : index
      %13 = vector.load %arg3[%c0_10, %c0_11] : memref<32x32xbf16, #tpu.memory_space<vmem>>, vector<32x32xbf16>
      %cst_12 = arith.constant dense<0.000000e+00> : vector<16x32xf32>
      %14 = tpu.matmul %12, %13, %cst_12 {dimension_numbers = #tpu.dot_dimension_numbers<[1], [0], [0], [1], [0, 0, 1, 1], [], []>} : vector<16x32xbf16>, vector<32x32xbf16>, vector<16x32xf32> -> vector<16x32xf32>
      %c0_13 = arith.constant 0 : index
      %c0_14 = arith.constant 0 : index
      %15 = vector.load %arg4[%c0_13, %c0_14] : memref<1x32xf32, #tpu.memory_space<vmem>>, vector<1x32xf32>
      %16 = vector.broadcast %15 : vector<1x32xf32> to vector<16x32xf32>
      %17 = arith.addf %14, %16 : vector<16x32xf32>
      %cst_15 = arith.constant 5.000000e-01 : f32
      %18 = vector.broadcast %cst_15 : f32 to vector<16x32xf32>
      %19 = arith.mulf %18, %17 : vector<16x32xf32>
      %cst_16 = arith.constant 0.707106769 : f32
      %20 = vector.broadcast %cst_16 : f32 to vector<16x32xf32>
      %21 = arith.mulf %17, %20 : vector<16x32xf32>
      %22 = math.erf %21 : vector<16x32xf32>
      %cst_17 = arith.constant 1.000000e+00 : f32
      %23 = vector.broadcast %cst_17 : f32 to vector<16x32xf32>
      %24 = arith.addf %23, %22 : vector<16x32xf32>
      %25 = arith.mulf %19, %24 : vector<16x32xf32>
      %cst_18 = arith.constant dense<0.000000e+00> : vector<16xf32>
      %26 = vector.multi_reduction <add>, %25, %cst_18 [1] : vector<16x32xf32> to vector<16xf32>
      %27 = vector.shape_cast %26 : vector<16xf32> to vector<16x1xf32>
      %cst_19 = arith.constant 3.200000e+01 : f32
      %28 = vector.broadcast %cst_19 : f32 to vector<16x1xf32>
      %29 = arith.divf %27, %28 : vector<16x1xf32>
      %30 = vector.broadcast %29 : vector<16x1xf32> to vector<16x32xf32>
      %31 = arith.subf %25, %30 : vector<16x32xf32>
      %32 = arith.mulf %31, %31 : vector<16x32xf32>
      %cst_20 = arith.constant dense<0.000000e+00> : vector<16xf32>
      %33 = vector.multi_reduction <add>, %32, %cst_20 [1] : vector<16x32xf32> to vector<16xf32>
      %34 = vector.shape_cast %33 : vector<16xf32> to vector<16x1xf32>
      %cst_21 = arith.constant 3.200000e+01 : f32
      %35 = vector.broadcast %cst_21 : f32 to vector<16x1xf32>
      %36 = arith.divf %34, %35 : vector<16x1xf32>
      %37 = vector.broadcast %29 : vector<16x1xf32> to vector<16x32xf32>
      %38 = arith.subf %25, %37 : vector<16x32xf32>
      %cst_22 = arith.constant 9.99999996E-13 : f32
      %39 = vector.broadcast %cst_22 : f32 to vector<16x1xf32>
      %40 = arith.addf %36, %39 : vector<16x1xf32>
      %41 = math.rsqrt %40 : vector<16x1xf32>
      %42 = vector.broadcast %41 : vector<16x1xf32> to vector<16x32xf32>
      %43 = arith.mulf %38, %42 : vector<16x32xf32>
      %c0_23 = arith.constant 0 : index
      %c0_24 = arith.constant 0 : index
      %44 = vector.load %arg5[%c0_23, %c0_24] : memref<1x32xf32, #tpu.memory_space<vmem>>, vector<1x32xf32>
      %45 = vector.broadcast %44 : vector<1x32xf32> to vector<16x32xf32>
      %46 = arith.mulf %43, %45 : vector<16x32xf32>
      %c0_25 = arith.constant 0 : index
      %c0_26 = arith.constant 0 : index
      %47 = vector.load %arg6[%c0_25, %c0_26] : memref<1x32xf32, #tpu.memory_space<vmem>>, vector<1x32xf32>
      %48 = vector.broadcast %47 : vector<1x32xf32> to vector<16x32xf32>
      %49 = arith.addf %46, %48 : vector<16x32xf32>
      %50 = arith.truncf %49 : vector<16x32xf32> to vector<16x32xbf16>
      %c0_27 = arith.constant 0 : index
      %c0_28 = arith.constant 0 : index
      %51 = vector.load %arg10[%c0_27, %c0_28] : memref<16x32xbf16, #tpu.memory_space<vmem>>, vector<16x32xbf16>
      tpu.vector_store %arg10[%c0_27, %c0_28], %50 {strides = array<i32>} : memref<16x32xbf16, #tpu.memory_space<vmem>>, vector<16x32xbf16>,
    } else {
    }
    %c0 = arith.constant 0 : index
    %c0_1 = arith.constant 0 : index
    %3 = vector.load %arg10[%c0, %c0_1] : memref<16x32xbf16, #tpu.memory_space<vmem>>, vector<16x32xbf16>
    %c0_2 = arith.constant 0 : index
    %c0_3 = arith.constant 0 : index
    %4 = vector.load %arg7[%c0_2, %c0_3] : memref<32x128xbf16, #tpu.memory_space<vmem>>, vector<32x128xbf16>
    %cst = arith.constant dense<0.000000e+00> : vector<16x128xf32>
    %5 = tpu.matmul %3, %4, %cst {dimension_numbers = #tpu.dot_dimension_numbers<[1], [0], [0], [1], [0, 0, 1, 1], [], []>} : vector<16x32xbf16>, vector<32x128xbf16>, vector<16x128xf32> -> vector<16x128xf32>
    %c0_4 = arith.constant 0 : index
    %c0_5 = arith.constant 0 : index
    %6 = vector.load %arg8[%c0_4, %c0_5] : memref<1x128xf32, #tpu.memory_space<vmem>>, vector<1x128xf32>
    %7 = vector.broadcast %6 : vector<1x128xf32> to vector<16x128xf32>
    %8 = arith.addf %5, %7 : vector<16x128xf32>
    %9 = arith.truncf %8 : vector<16x128xf32> to vector<16x128xbf16>
    %c0_6 = arith.constant 0 : index
    %c0_7 = arith.constant 0 : index
    %10 = vector.load %arg9[%c0_6, %c0_7] : memref<16x128xbf16, #tpu.memory_space<vmem>>, vector<16x128xbf16>
    tpu.vector_store %arg9[%c0_6, %c0_7], %9 {strides = array<i32>} : memref<16x128xbf16, #tpu.memory_space<vmem>>, vector<16x128xbf16>,
    return
  }
  func.func @transform_0(%arg0: i32, %arg1: i32) -> (i32, i32) {
    %c0_i32 = arith.constant 0 : i32
    %c0_i32_0 = arith.constant 0 : i32
    return %arg0, %c0_i32 : i32, i32
  }
  func.func @transform_1(%arg0: i32, %arg1: i32) -> (i32, i32) {
    %c0_i32 = arith.constant 0 : i32
    %c0_i32_0 = arith.constant 0 : i32
    %c0_i32_1 = arith.constant 0 : i32
    return %c0_i32, %c0_i32_0 : i32, i32
  }
  func.func @transform_2(%arg0: i32, %arg1: i32) -> (i32, i32) {
    %c0_i32 = arith.constant 0 : i32
    %c0_i32_0 = arith.constant 0 : i32
    %c0_i32_1 = arith.constant 0 : i32
    return %c0_i32, %c0_i32_0 : i32, i32
  }
  func.func @transform_3(%arg0: i32, %arg1: i32) -> (i32, i32) {
    %c0_i32 = arith.constant 0 : i32
    %c0_i32_0 = arith.constant 0 : i32
    %c0_i32_1 = arith.constant 0 : i32
    return %c0_i32, %c0_i32_0 : i32, i32
  }
  func.func @transform_4(%arg0: i32, %arg1: i32) -> (i32, i32) {
    %c0_i32 = arith.constant 0 : i32
    %c0_i32_0 = arith.constant 0 : i32
    %c0_i32_1 = arith.constant 0 : i32
    return %c0_i32, %c0_i32_0 : i32, i32
  }
  func.func @transform_5(%arg0: i32, %arg1: i32) -> (i32, i32) {
    %c0_i32 = arith.constant 0 : i32
    %c0_i32_0 = arith.constant 0 : i32
    return %c0_i32, %arg1 : i32, i32
  }
  func.func @transform_6(%arg0: i32, %arg1: i32) -> (i32, i32) {
    %c0_i32 = arith.constant 0 : i32
    %c0_i32_0 = arith.constant 0 : i32
    return %c0_i32, %arg1 : i32, i32
  }
  func.func @transform_7(%arg0: i32, %arg1: i32) -> (i32, i32) {
    %c0_i32 = arith.constant 0 : i32
    return %arg0, %arg1 : i32, i32
  }
}

</mosaic_0001>

<llo_original>
// kernel: vlm_pretraining_head.3
$region0: #{vlm_pretraining_head.3}
  #allocation0 [shape = 'u32[]', space=smem, size = 0x4, offset = 0x4, fixed_abs, tag = 'smem constant byte address 0x4 - core index']
  #allocation1 [shape = 'u32[144,128]{1,0:T(1,128)}', space=vmem, size = 0x12000, scoped, tag = 'internal scratch']
  %s0 = inlined_call_operand.vmem [shape: f32[2,32], index: 0, kind: input, shape index: {}]
  %s1 = inlined_call_operand.vmem [shape: f32[32,512], index: 1, kind: input, shape index: {}]
  %s2 = inlined_call_operand.vmem [shape: f32[1,512], index: 2, kind: input, shape index: {}]
  %s3 = inlined_call_operand.vmem [shape: f32[512,2], index: 3, kind: input, shape index: {}]
  %s4 = inlined_call_operand.vmem [shape: f32[1,2], index: 4, kind: input, shape index: {}]
  %s5 = inlined_call_operand.hbm [shape: f32[2,2], index: 5, kind: output, shape index: {}]
  %s6 = sld [smem:[#allocation0]]
  $region30: #{vlm_pretraining_head.3} parent=0
    _
  %s8 = ssub.s32 1, %s6
  %s9 = scalar_select 0, %s8, %s6
  $region1: #{vlm_pretraining_head.3} parent=0
    #allocation2 [shape = 'u8[1024]{0}', space=vmem, size = 0x400, scoped, tag = 'output window, operand 0, single buffered']
    #allocation3 [shape = 's32[1]{0}', space=sflag, size = 0x4, scoped, tag = 'scoped memory for vlm_pretraining_head.3']
    %10 = vsyncpa [#allocation3], 0
    // Predicated region
    $region2: #{vlm_pretraining_head.3} parent=1 // pred_check
      _
    $region3: #{vlm_pretraining_head.3} parent=1 // pred_check_branch
      %12 = sbr.rel (0) target = $region5
    $region4: #{vlm_pretraining_head.3} parent=1 // pred_region
      _
    $region5: #{vlm_pretraining_head.3} parent=1 // pred_fallthru
      _
    // Predicated region
    $region6: #{vlm_pretraining_head.3} parent=1 // pred_check
      _
    $region7: #{vlm_pretraining_head.3} parent=1 // pred_check_branch
      %14 = sbr.rel (0) target = $region9
    $region8: #{vlm_pretraining_head.3} parent=1 // pred_region
      _
    $region9: #{vlm_pretraining_head.3} parent=1 // pred_fallthru
      _
    // Predicated region
    $region10: #{vlm_pretraining_head.3} parent=1 // pred_check
      _
    $region11: #{vlm_pretraining_head.3} parent=1 // pred_check_branch
      %16 = sbr.rel (0) target = $region13
    $region12: #{vlm_pretraining_head.3} parent=1 // pred_region
      _
    $region13: #{vlm_pretraining_head.3} parent=1 // pred_fallthru
      _
    // Predicated region
    $region14: #{vlm_pretraining_head.3} parent=1 // pred_check
      _
    $region15: #{vlm_pretraining_head.3} parent=1 // pred_check_branch
      %18 = sbr.rel (0) target = $region17
    $region16: #{vlm_pretraining_head.3} parent=1 // pred_region
      _
    $region17: #{vlm_pretraining_head.3} parent=1 // pred_fallthru
      _
    // Predicated region
    $region18: #{vlm_pretraining_head.3} parent=1 // pred_check
      _
    $region19: #{vlm_pretraining_head.3} parent=1 // pred_check_branch
      %20 = sbr.rel (0) target = $region21
    $region20: #{vlm_pretraining_head.3} parent=1 // pred_region
      _
    $region21: #{vlm_pretraining_head.3} parent=1 // pred_fallthru
      _
    %v21 = vld [vmem:[%s0] sm:$0x3]
    %v22 = vld [vmem:[%s1] sm:$0xff]
    %v23 = vld [vmem:[%s1 + $0x8] sm:$0xff]
    %v24 = vld [vmem:[%s1 + $0x10] sm:$0xff]
    %v25 = vld [vmem:[%s1 + $0x18] sm:$0xff]
    %v26 = vld [vmem:[%s1 + $0x20] sm:$0xff]
    %v27 = vld [vmem:[%s1 + $0x28] sm:$0xff]
    %v28 = vld [vmem:[%s1 + $0x30] sm:$0xff]
    %v29 = vld [vmem:[%s1 + $0x38] sm:$0xff]
    %v30 = vld [vmem:[%s1 + $0x40] sm:$0xff]
    %v31 = vld [vmem:[%s1 + $0x48] sm:$0xff]
    %v32 = vld [vmem:[%s1 + $0x50] sm:$0xff]
    %v33 = vld [vmem:[%s1 + $0x58] sm:$0xff]
    %v34 = vld [vmem:[%s1 + $0x60] sm:$0xff]
    %v35 = vld [vmem:[%s1 + $0x68] sm:$0xff]
    %v36 = vld [vmem:[%s1 + $0x70] sm:$0xff]
    %v37 = vld [vmem:[%s1 + $0x78] sm:$0xff]
    %v38 = vld [vmem:[%s2] sm:$0xf]
    %v40 = vlaneseq
    %v41 = vshrl.u32 %v40, 7
    %v42 = vsub.s32 0, %v41
    %v43 = vrot.slane %v38, %v42
    %v44 = vlaneseq
    %v45 = vshrl.u32 %v44, 7
    %v46 = vsub.s32 1, %v45
    %v47 = vrot.slane %v38, %v46
    %v48 = vlaneseq
    %v49 = vshrl.u32 %v48, 7
    %v50 = vsub.s32 2, %v49
    %v51 = vrot.slane %v38, %v50
    %v52 = vlaneseq
    %v53 = vshrl.u32 %v52, 7
    %v54 = vsub.s32 3, %v53
    %v55 = vrot.slane %v38, %v54
    %vm60 = vcmask 261120
    %v62 = vsel %vm60, %v21, 0
    %64 = vmatprep.subr.mxu0 %v23
    %65 = vmatpush1.msra.mxu0 %v22
    %66 = vmatprep.subr.mxu0 %v27
    %67 = vmatpush1.msra.mxu0 %v26
    %68 = vmatprep.subr.mxu0 %v31
    %69 = vmatpush1.msra.mxu0 %v30
    %70 = vmatprep.subr.mxu0 %v35
    %71 = vmatpush1.msra.mxu0 %v34
    %72 = vmatprep.subr.mxu0 0.0
    %73 = vmatpush1.msra.mxu0 0.0
    %74 = vmatprep.subr.mxu0 0.0
    %75 = vmatpush1.msra.mxu0 0.0
    %76 = vmatprep.subr.mxu0 0.0
    %77 = vmatpush1.msra.mxu0 0.0
    %78 = vmatprep.subr.mxu0 0.0
    %79 = vmatpush1.msra.mxu0 0.0
    %80 = vmatprep.subr.mxu0 0.0
    %81 = vmatpush1.msra.mxu0 0.0
    %82 = vmatprep.subr.mxu0 0.0
    %83 = vmatpush1.msra.mxu0 0.0
    %84 = vmatprep.subr.mxu0 0.0
    %85 = vmatpush1.msra.mxu0 0.0
    %86 = vmatprep.subr.mxu0 0.0
    %87 = vmatpush1.msra.mxu0 0.0
    %88 = vmatprep.subr.mxu0 0.0
    %89 = vmatpush1.msra.mxu0 0.0
    %90 = vmatprep.subr.mxu0 0.0
    %91 = vmatpush1.msra.mxu0 0.0
    %92 = vmatprep.subr.mxu0 0.0
    %93 = vmatpush1.msra.mxu0 0.0
    %94 = vmatprep.subr.mxu0 0.0
    %95 = vmatpush1.msra.mxu0 0.0
    %96 = vmatprep.subr.mxu0 0.0
    %97 = vmatpush1.msra.mxu0 0.0
    %98 = vmatprep.subr.mxu0 0.0
    %99 = vmatpush1.msra.mxu0 0.0
    %100 = vmatprep.subr.mxu0 0.0
    %101 = vmatpush1.msra.mxu0 0.0
    %102 = vmatprep.subr.mxu0 0.0
    %103 = vmatpush1.msra.mxu0 0.0
    %104 = vmatprep.subr.mxu0 0.0
    %105 = vmatpush1.msra.mxu0 0.0
    %106 = vmatprep.subr.mxu0 0.0
    %107 = vmatpush1.msra.mxu0 0.0
    %108 = vmatprep.subr.mxu0 0.0
    %109 = vmatpush1.msra.mxu0 0.0
    %110 = vmatprep.subr.mxu0 0.0
    %111 = vmatpush1.msra.mxu0 0.0
    %112 = vmatprep.subr.mxu0 0.0
    %113 = vmatpush1.msra.mxu0 0.0
    %114 = vmatprep.subr.mxu0 0.0
    %115 = vmatpush1.msra.mxu0 0.0
    %116 = vmatprep.subr.mxu0 0.0
    %117 = vmatpush1.msra.mxu0 0.0
    %118 = vmatprep.subr.mxu0 0.0
    %119 = vmatpush1.msra.mxu0 0.0
    %120 = vmatprep.subr.mxu0 0.0
    %121 = vmatpush1.msra.mxu0 0.0
    %122 = vmatprep.subr.mxu0 0.0
    %123 = vmatpush1.msra.mxu0 0.0
    %124 = vmatprep.subr.mxu0 0.0
    %125 = vmatpush1.msra.mxu0 0.0
    %126 = vmatprep.subr.mxu0 0.0
    %127 = vmatpush1.msra.mxu0 0.0
    %128 = vmatprep.mubr.f32.mxu0 0.0
    %129 = vmatmul.mubr.f32.gmra.mrb[0].mxu0 %v62
    %v130 = vpop.f32.mrb[0].mxu0
    %v131 = vadd.f32 %v43, %v130
    %v132 = vpop.f32.mrb[0].mxu0
    %v133 = vadd.f32 %v47, %v132
    %134 = vdwg.mxu0
    %135 = vmatprep.subr.mxu0 %v25
    %136 = vmatpush1.msra.mxu0 %v24
    %137 = vmatprep.subr.mxu0 %v29
    %138 = vmatpush1.msra.mxu0 %v28
    %139 = vmatprep.subr.mxu0 %v33
    %140 = vmatpush1.msra.mxu0 %v32
    %141 = vmatprep.subr.mxu0 %v37
    %142 = vmatpush1.msra.mxu0 %v36
    %143 = vmatprep.subr.mxu0 0.0
    %144 = vmatpush1.msra.mxu0 0.0
    %145 = vmatprep.subr.mxu0 0.0
    %146 = vmatpush1.msra.mxu0 0.0
    %147 = vmatprep.subr.mxu0 0.0
    %148 = vmatpush1.msra.mxu0 0.0
    %149 = vmatprep.subr.mxu0 0.0
    %150 = vmatpush1.msra.mxu0 0.0
    %151 = vmatprep.subr.mxu0 0.0
    %152 = vmatpush1.msra.mxu0 0.0
    %153 = vmatprep.subr.mxu0 0.0
    %154 = vmatpush1.msra.mxu0 0.0
    %155 = vmatprep.subr.mxu0 0.0
    %156 = vmatpush1.msra.mxu0 0.0
    %157 = vmatprep.subr.mxu0 0.0
    %158 = vmatpush1.msra.mxu0 0.0
    %159 = vmatprep.subr.mxu0 0.0
    %160 = vmatpush1.msra.mxu0 0.0
    %161 = vmatprep.subr.mxu0 0.0
    %162 = vmatpush1.msra.mxu0 0.0
    %163 = vmatprep.subr.mxu0 0.0
    %164 = vmatpush1.msra.mxu0 0.0
    %165 = vmatprep.subr.mxu0 0.0
    %166 = vmatpush1.msra.mxu0 0.0
    %167 = vmatprep.subr.mxu0 0.0
    %168 = vmatpush1.msra.mxu0 0.0
    %169 = vmatprep.subr.mxu0 0.0
    %170 = vmatpush1.msra.mxu0 0.0
    %171 = vmatprep.subr.mxu0 0.0
    %172 = vmatpush1.msra.mxu0 0.0
    %173 = vmatprep.subr.mxu0 0.0
    %174 = vmatpush1.msra.mxu0 0.0
    %175 = vmatprep.subr.mxu0 0.0
    %176 = vmatpush1.msra.mxu0 0.0
    %177 = vmatprep.subr.mxu0 0.0
    %178 = vmatpush1.msra.mxu0 0.0
    %179 = vmatprep.subr.mxu0 0.0
    %180 = vmatpush1.msra.mxu0 0.0
    %181 = vmatprep.subr.mxu0 0.0
    %182 = vmatpush1.msra.mxu0 0.0
    %183 = vmatprep.subr.mxu0 0.0
    %184 = vmatpush1.msra.mxu0 0.0
    %185 = vmatprep.subr.mxu0 0.0
    %186 = vmatpush1.msra.mxu0 0.0
    %187 = vmatprep.subr.mxu0 0.0
    %188 = vmatpush1.msra.mxu0 0.0
    %189 = vmatprep.subr.mxu0 0.0
    %190 = vmatpush1.msra.mxu0 0.0
    %191 = vmatprep.subr.mxu0 0.0
    %192 = vmatpush1.msra.mxu0 0.0
    %193 = vmatprep.subr.mxu0 0.0
    %194 = vmatpush1.msra.mxu0 0.0
    %195 = vmatprep.subr.mxu0 0.0
    %196 = vmatpush1.msra.mxu0 0.0
    %197 = vmatprep.subr.mxu0 0.0
    %198 = vmatpush1.msra.mxu0 0.0
    %199 = vmatprep.mubr.f32.mxu0 0.0
    %200 = vmatmul.mubr.f32.gmra.mrb[0].mxu0 %v62
    %v201 = vpop.f32.mrb[0].mxu0
    %v202 = vadd.f32 %v51, %v201
    %v203 = vpop.f32.mrb[0].mxu0
    %v204 = vadd.f32 %v55, %v203
    %205 = vdwg.mxu0
    %v206 = vmax.f32 %v131, 0.0
    %v207 = vmax.f32 %v133, 0.0
    %v208 = vmax.f32 %v202, 0.0
    %v209 = vmax.f32 %v204, 0.0
    %v210 = vld [vmem:[%s3] sm:$0xff]
    %v211 = vld [vmem:[%s3 + $0x8] sm:$0xff]
    %v212 = vld [vmem:[%s3 + $0x10] sm:$0xff]
    %v213 = vld [vmem:[%s3 + $0x18] sm:$0xff]
    %v214 = vld [vmem:[%s3 + $0x20] sm:$0xff]
    %v215 = vld [vmem:[%s3 + $0x28] sm:$0xff]
    %v216 = vld [vmem:[%s3 + $0x30] sm:$0xff]
    %v217 = vld [vmem:[%s3 + $0x38] sm:$0xff]
    %v218 = vld [vmem:[%s3 + $0x40] sm:$0xff]
    %v219 = vld [vmem:[%s3 + $0x48] sm:$0xff]
    %v220 = vld [vmem:[%s3 + $0x50] sm:$0xff]
    %v221 = vld [vmem:[%s3 + $0x58] sm:$0xff]
    %v222 = vld [vmem:[%s3 + $0x60] sm:$0xff]
    %v223 = vld [vmem:[%s3 + $0x68] sm:$0xff]
    %v224 = vld [vmem:[%s3 + $0x70] sm:$0xff]
    %v225 = vld [vmem:[%s3 + $0x78] sm:$0xff]
    %v226 = vld [vmem:[%s3 + $0x80] sm:$0xff]
    %v227 = vld [vmem:[%s3 + $0x88] sm:$0xff]
    %v228 = vld [vmem:[%s3 + $0x90] sm:$0xff]
    %v229 = vld [vmem:[%s3 + $0x98] sm:$0xff]
    %v230 = vld [vmem:[%s3 + $0xa0] sm:$0xff]
    %v231 = vld [vmem:[%s3 + $0xa8] sm:$0xff]
    %v232 = vld [vmem:[%s3 + $0xb0] sm:$0xff]
    %v233 = vld [vmem:[%s3 + $0xb8] sm:$0xff]
    %v234 = vld [vmem:[%s3 + $0xc0] sm:$0xff]
    %v235 = vld [vmem:[%s3 + $0xc8] sm:$0xff]
    %v236 = vld [vmem:[%s3 + $0xd0] sm:$0xff]
    %v237 = vld [vmem:[%s3 + $0xd8] sm:$0xff]
    %v238 = vld [vmem:[%s3 + $0xe0] sm:$0xff]
    %v239 = vld [vmem:[%s3 + $0xe8] sm:$0xff]
    %v240 = vld [vmem:[%s3 + $0xf0] sm:$0xff]
    %v241 = vld [vmem:[%s3 + $0xf8] sm:$0xff]
    %v242 = vld [vmem:[%s3 + $0x100] sm:$0xff]
    %v243 = vld [vmem:[%s3 + $0x108] sm:$0xff]
    %v244 = vld [vmem:[%s3 + $0x110] sm:$0xff]
    %v245 = vld [vmem:[%s3 + $0x118] sm:$0xff]
    %v246 = vld [vmem:[%s3 + $0x120] sm:$0xff]
    %v247 = vld [vmem:[%s3 + $0x128] sm:$0xff]
    %v248 = vld [vmem:[%s3 + $0x130] sm:$0xff]
    %v249 = vld [vmem:[%s3 + $0x138] sm:$0xff]
    %v250 = vld [vmem:[%s3 + $0x140] sm:$0xff]
    %v251 = vld [vmem:[%s3 + $0x148] sm:$0xff]
    %v252 = vld [vmem:[%s3 + $0x150] sm:$0xff]
    %v253 = vld [vmem:[%s3 + $0x158] sm:$0xff]
    %v254 = vld [vmem:[%s3 + $0x160] sm:$0xff]
    %v255 = vld [vmem:[%s3 + $0x168] sm:$0xff]
    %v256 = vld [vmem:[%s3 + $0x170] sm:$0xff]
    %v257 = vld [vmem:[%s3 + $0x178] sm:$0xff]
    %v258 = vld [vmem:[%s3 + $0x180] sm:$0xff]
    %v259 = vld [vmem:[%s3 + $0x188] sm:$0xff]
    %v260 = vld [vmem:[%s3 + $0x190] sm:$0xff]
    %v261 = vld [vmem:[%s3 + $0x198] sm:$0xff]
    %v262 = vld [vmem:[%s3 + $0x1a0] sm:$0xff]
    %v263 = vld [vmem:[%s3 + $0x1a8] sm:$0xff]
    %v264 = vld [vmem:[%s3 + $0x1b0] sm:$0xff]
    %v265 = vld [vmem:[%s3 + $0x1b8] sm:$0xff]
    %v266 = vld [vmem:[%s3 + $0x1c0] sm:$0xff]
    %v267 = vld [vmem:[%s3 + $0x1c8] sm:$0xff]
    %v268 = vld [vmem:[%s3 + $0x1d0] sm:$0xff]
    %v269 = vld [vmem:[%s3 + $0x1d8] sm:$0xff]
    %v270 = vld [vmem:[%s3 + $0x1e0] sm:$0xff]
    %v271 = vld [vmem:[%s3 + $0x1e8] sm:$0xff]
    %v272 = vld [vmem:[%s3 + $0x1f0] sm:$0xff]
    %v273 = vld [vmem:[%s3 + $0x1f8] sm:$0xff]
    %v274 = vld [vmem:[%s4] sm:$0x1]
    %v276 = vlaneseq
    %v277 = vshrl.u32 %v276, 7
    %v278 = vsub.s32 0, %v277
    %v279 = vrot.slane %v274, %v278
    %281 = vmatprep.subr.mxu0 0.0
    %282 = vmatpush1.msra.mxu0 %v210
    %283 = vmatprep.subr.mxu0 0.0
    %284 = vmatpush1.msra.mxu0 %v211
    %285 = vmatprep.subr.mxu0 0.0
    %286 = vmatpush1.msra.mxu0 %v212
    %287 = vmatprep.subr.mxu0 0.0
    %288 = vmatpush1.msra.mxu0 %v213
    %289 = vmatprep.subr.mxu0 0.0
    %290 = vmatpush1.msra.mxu0 %v214
    %291 = vmatprep.subr.mxu0 0.0
    %292 = vmatpush1.msra.mxu0 %v215
    %293 = vmatprep.subr.mxu0 0.0
    %294 = vmatpush1.msra.mxu0 %v216
    %295 = vmatprep.subr.mxu0 0.0
    %296 = vmatpush1.msra.mxu0 %v217
    %297 = vmatprep.subr.mxu0 0.0
    %298 = vmatpush1.msra.mxu0 %v218
    %299 = vmatprep.subr.mxu0 0.0
    %300 = vmatpush1.msra.mxu0 %v219
    %301 = vmatprep.subr.mxu0 0.0
    %302 = vmatpush1.msra.mxu0 %v220
    %303 = vmatprep.subr.mxu0 0.0
    %304 = vmatpush1.msra.mxu0 %v221
    %305 = vmatprep.subr.mxu0 0.0
    %306 = vmatpush1.msra.mxu0 %v222
    %307 = vmatprep.subr.mxu0 0.0
    %308 = vmatpush1.msra.mxu0 %v223
    %309 = vmatprep.subr.mxu0 0.0
    %310 = vmatpush1.msra.mxu0 %v224
    %311 = vmatprep.subr.mxu0 0.0
    %312 = vmatpush1.msra.mxu0 %v225
    %313 = vmatprep.subr.mxu0 0.0
    %314 = vmatpush1.msra.mxu0 %v226
    %315 = vmatprep.subr.mxu0 0.0
    %316 = vmatpush1.msra.mxu0 %v227
    %317 = vmatprep.subr.mxu0 0.0
    %318 = vmatpush1.msra.mxu0 %v228
    %319 = vmatprep.subr.mxu0 0.0
    %320 = vmatpush1.msra.mxu0 %v229
    %321 = vmatprep.subr.mxu0 0.0
    %322 = vmatpush1.msra.mxu0 %v230
    %323 = vmatprep.subr.mxu0 0.0
    %324 = vmatpush1.msra.mxu0 %v231
    %325 = vmatprep.subr.mxu0 0.0
    %326 = vmatpush1.msra.mxu0 %v232
    %327 = vmatprep.subr.mxu0 0.0
    %328 = vmatpush1.msra.mxu0 %v233
    %329 = vmatprep.subr.mxu0 0.0
    %330 = vmatpush1.msra.mxu0 %v234
    %331 = vmatprep.subr.mxu0 0.0
    %332 = vmatpush1.msra.mxu0 %v235
    %333 = vmatprep.subr.mxu0 0.0
    %334 = vmatpush1.msra.mxu0 %v236
    %335 = vmatprep.subr.mxu0 0.0
    %336 = vmatpush1.msra.mxu0 %v237
    %337 = vmatprep.subr.mxu0 0.0
    %338 = vmatpush1.msra.mxu0 %v238
    %339 = vmatprep.subr.mxu0 0.0
    %340 = vmatpush1.msra.mxu0 %v239
    %341 = vmatprep.subr.mxu0 0.0
    %342 = vmatpush1.msra.mxu0 %v240
    %343 = vmatprep.subr.mxu0 0.0
    %344 = vmatpush1.msra.mxu0 %v241
    %345 = vmatprep.mubr.f32.mxu0 %v207
    %346 = vmatmul.mubr.f32.gmra.mrb[0].mxu0 %v206
    %v347 = vpop.f32.mrb[0].mxu0
    %v348 = vadd.f32 %v279, %v347
    %v349 = vpop.f32.mrb[0].mxu0
    %350 = vdwg.mxu0
    %351 = vmatprep.subr.mxu0 0.0
    %352 = vmatpush1.msra.mxu0 %v242
    %353 = vmatprep.subr.mxu0 0.0
    %354 = vmatpush1.msra.mxu0 %v243
    %355 = vmatprep.subr.mxu0 0.0
    %356 = vmatpush1.msra.mxu0 %v244
    %357 = vmatprep.subr.mxu0 0.0
    %358 = vmatpush1.msra.mxu0 %v245
    %359 = vmatprep.subr.mxu0 0.0
    %360 = vmatpush1.msra.mxu0 %v246
    %361 = vmatprep.subr.mxu0 0.0
    %362 = vmatpush1.msra.mxu0 %v247
    %363 = vmatprep.subr.mxu0 0.0
    %364 = vmatpush1.msra.mxu0 %v248
    %365 = vmatprep.subr.mxu0 0.0
    %366 = vmatpush1.msra.mxu0 %v249
    %367 = vmatprep.subr.mxu0 0.0
    %368 = vmatpush1.msra.mxu0 %v250
    %369 = vmatprep.subr.mxu0 0.0
    %370 = vmatpush1.msra.mxu0 %v251
    %371 = vmatprep.subr.mxu0 0.0
    %372 = vmatpush1.msra.mxu0 %v252
    %373 = vmatprep.subr.mxu0 0.0
    %374 = vmatpush1.msra.mxu0 %v253
    %375 = vmatprep.subr.mxu0 0.0
    %376 = vmatpush1.msra.mxu0 %v254
    %377 = vmatprep.subr.mxu0 0.0
    %378 = vmatpush1.msra.mxu0 %v255
    %379 = vmatprep.subr.mxu0 0.0
    %380 = vmatpush1.msra.mxu0 %v256
    %381 = vmatprep.subr.mxu0 0.0
    %382 = vmatpush1.msra.mxu0 %v257
    %383 = vmatprep.subr.mxu0 0.0
    %384 = vmatpush1.msra.mxu0 %v258
    %385 = vmatprep.subr.mxu0 0.0
    %386 = vmatpush1.msra.mxu0 %v259
    %387 = vmatprep.subr.mxu0 0.0
    %388 = vmatpush1.msra.mxu0 %v260
    %389 = vmatprep.subr.mxu0 0.0
    %390 = vmatpush1.msra.mxu0 %v261
    %391 = vmatprep.subr.mxu0 0.0
    %392 = vmatpush1.msra.mxu0 %v262
    %393 = vmatprep.subr.mxu0 0.0
    %394 = vmatpush1.msra.mxu0 %v263
    %395 = vmatprep.subr.mxu0 0.0
    %396 = vmatpush1.msra.mxu0 %v264
    %397 = vmatprep.subr.mxu0 0.0
    %398 = vmatpush1.msra.mxu0 %v265
    %399 = vmatprep.subr.mxu0 0.0
    %400 = vmatpush1.msra.mxu0 %v266
    %401 = vmatprep.subr.mxu0 0.0
    %402 = vmatpush1.msra.mxu0 %v267
    %403 = vmatprep.subr.mxu0 0.0
    %404 = vmatpush1.msra.mxu0 %v268
    %405 = vmatprep.subr.mxu0 0.0
    %406 = vmatpush1.msra.mxu0 %v269
    %407 = vmatprep.subr.mxu0 0.0
    %408 = vmatpush1.msra.mxu0 %v270
    %409 = vmatprep.subr.mxu0 0.0
    %410 = vmatpush1.msra.mxu0 %v271
    %411 = vmatprep.subr.mxu0 0.0
    %412 = vmatpush1.msra.mxu0 %v272
    %413 = vmatprep.subr.mxu0 0.0
    %414 = vmatpush1.msra.mxu0 %v273
    %415 = vmatprep.mubr.f32.mxu0 %v209
    %416 = vmatmul.mubr.f32.gmra.mrb[0].mxu0 %v208
    %v417 = vpop.f32.mrb[0].mxu0
    %v418 = vadd.f32 %v348, %v417
    %v419 = vpop.f32.mrb[0].mxu0
    %420 = vdwg.mxu0
    %vm421 = vcmask 9216
    %422 = vst.msk [vmem:[#allocation2] sm:$0x3] %vm421, %v418
    // Predicated region
    $region22: #{vlm_pretraining_head.3} parent=1 // pred_check
      _
    $region23: #{vlm_pretraining_head.3} parent=1 // pred_check_branch
      %424 = sbr.rel (0) target = $region25
    $region24: #{vlm_pretraining_head.3} parent=1 // pred_region
      %s426 = ssub.s32 32, 32
      %427 = vsyncadd [#allocation3], %s426
      %s429 = sshll.u32 [#allocation2], 4
      %s430 = int_to_ptr.vmem [resolvable:$true] %s429
      %432 = dma.vmem_to_hbm [thread:$0]  %s430, 32, %s5, [#allocation3]
    $region25: #{vlm_pretraining_head.3} parent=1 // pred_fallthru
      _
    // Predicated region
    $region26: #{vlm_pretraining_head.3} parent=1 // pred_check
      _
    $region27: #{vlm_pretraining_head.3} parent=1 // pred_check_branch
      %434 = sbr.rel (0) target = $region29
    $region28: #{vlm_pretraining_head.3} parent=1 // pred_region
      %435 = dma.done [#allocation3], 32
    $region29: #{vlm_pretraining_head.3} parent=1 // pred_fallthru
      _
    %436 = vsyncpa [#allocation3], 1

// kernel: vlm_pretraining_head.2
$region0: #{vlm_pretraining_head.2}
  #allocation0 [shape = 'u32[]', space=smem, size = 0x4, offset = 0x4, fixed_abs, tag = 'smem constant byte address 0x4 - core index']
  #allocation1 [shape = 'u32[144,128]{1,0:T(1,128)}', space=vmem, size = 0x12000, scoped, tag = 'internal scratch']
  #allocation2 [shape = 'bf16[16,32]{1,0:T(16,128)(2,1)}', space=vmem, size = 0x1000, scoped, tag = 'scratch operand']
  %s0 = inlined_call_operand.vmem [shape: f32[32,32], index: 0, kind: input, shape index: {}]
  %s1 = inlined_call_operand.vmem [shape: bf16[32,32], index: 1, kind: input, shape index: {}]
  %s2 = inlined_call_operand.vmem [shape: f32[1,32], index: 2, kind: input, shape index: {}]
  %s3 = inlined_call_operand.vmem [shape: f32[1,32], index: 3, kind: input, shape index: {}]
  %s4 = inlined_call_operand.vmem [shape: f32[1,32], index: 4, kind: input, shape index: {}]
  %s5 = inlined_call_operand.vmem [shape: bf16[32,384], index: 5, kind: input, shape index: {}]
  %s6 = inlined_call_operand.vmem [shape: f32[1,384], index: 6, kind: input, shape index: {}]
  %s7 = inlined_call_operand.vmem [shape: bf16[32,384], index: 7, kind: output, shape index: {}]
  %s8 = sld [smem:[#allocation0]]
  $region143: #{vlm_pretraining_head.2} parent=0
    _
  %s10 = ssub.s32 1, %s8
  %s11 = scalar_select 0, %s10, %s8
  $region1: #{vlm_pretraining_head.2} parent=0
    #allocation3 [shape = 'u8[16384]{0}', space=vmem, size = 0x4000, scoped, tag = 'input window, operand 5']
    #allocation4 [shape = 'u8[8192]{0}', space=vmem, size = 0x2000, scoped, tag = 'output window, operand 0']
    loop: start=0, step=1, limit=8
    $region2: #{vlm_pretraining_head.2} parent=1 // loop_pre_header
      _
    $region3: #{vlm_pretraining_head.2} parent=1 // loop_header
      %s13 = sphi 0, %s17
      %p14 = scmp.ge.s32.totalorder %s13, 8
      %s20 = sphi 0, %s32
      %s21 = sphi 0, %s28
      %s22 = sphi 0, %s20
      %s23 = sphi 0, %s21
      %s24 = sphi 0, %s22
      %s25 = sphi 0, %s23
      %s35 = sphi 0, %s37
      %s38 = sphi 0, %s35
      %s39 = sphi 0, %s38
      %s55 = sphi 0, %s39
      %s59 = sphi 0, %s59
      %s61 = sphi 0, %s59
      %s62 = sphi 0, %s61
      %s76 = sphi 0, %s62
      %s80 = sphi 0, %s80
      %s82 = sphi 0, %s80
      %s83 = sphi 0, %s82
      %s97 = sphi 0, %s83
      %s101 = sphi 0, %s101
      %s103 = sphi 0, %s101
      %s104 = sphi 0, %s103
      %s118 = sphi 0, %s104
      %s122 = sphi 0, %s122
      %s124 = sphi 0, %s122
      %s125 = sphi 0, %s124
      %s139 = sphi 0, %s125
      %s145 = sphi 0, %s147
      %s148 = sphi 0, %s145
      %s149 = sphi 0, %s148
      %s165 = sphi 0, %s149
      %s171 = sphi 0, %s173
      %s174 = sphi 0, %s171
      %s175 = sphi 0, %s174
      %s191 = sphi 0, %s175
      %s199 = sphi 0, %s201
      %s202 = sphi 0, %s199
      %s203 = sphi 0, %s202
      %s219 = sphi 0, %s203
    $region4: #{vlm_pretraining_head.2} parent=1 // loop_header_branch
      %16 = sbr.rel (%p14) target = $region8
    $region5: #{vlm_pretraining_head.2} parent=1 // loop_body
      %s18 = ssub.s32 %s13, 1
      %s19 = ssub.s32 %s13, 2
      %s26 = sadd.s32 1, %s21
      %p27 = scmp.ge.s32.totalorder %s26, 3
      %s28 = scalar_select %p27, 0, %s26
      %s29 = sadd.s32 1, %s20
      %s30 = scalar_select %p27, %s29, %s20
      %p31 = scmp.ge.s32.totalorder %s30, 2
      %s32 = scalar_select %p31, 0, %s30
      %s33 = ssub.s32 %s20, %s32
      %p34 = scmp.eq.s32.totalorder %s33, 0
      %s36 = sadd.s32 %s35, 1
      %s37 = scalar_select %p34, %s35, %s36
      %p40 = pneg %p34
      %p41 = scmp.eq.s32.totalorder %s13, 5
      %p42 = por %p40, %p41
      %p43 = scmp.ne.s32.totalorder %s35, %s38
      %p44 = scmp.eq.s32.totalorder %s13, 0
      %p45 = por %p43, %p44
      %p46 = scmp.ne.s32.totalorder %s35, %s38
      %p47 = scmp.eq.s32.totalorder %s18, 5
      %p48 = por %p46, %p47
      %p49 = scmp.ne.s32.totalorder %s38, %s39
      %p50 = scmp.eq.s32.totalorder %s18, 0
      %p51 = por %p49, %p50
      %p52 = scmp.ne.s32.totalorder %s38, %s39
      %p53 = scmp.eq.s32.totalorder %s19, 5
      %p54 = por %p52, %p53
      %p56 = scmp.ne.s32.totalorder %s39, %s55
      %p57 = scmp.eq.s32.totalorder %s19, 0
      %p58 = por %p56, %p57
      %s60 = sadd.s32 %s59, 1
      %p63 = scmp.eq.s32.totalorder %s13, 5
      %p64 = scmp.ne.s32.totalorder %s59, %s61
      %p65 = scmp.eq.s32.totalorder %s13, 0
      %p66 = por %p64, %p65
      %p67 = scmp.ne.s32.totalorder %s59, %s61
      %p68 = scmp.eq.s32.totalorder %s18, 5
      %p69 = por %p67, %p68
      %p70 = scmp.ne.s32.totalorder %s61, %s62
      %p71 = scmp.eq.s32.totalorder %s18, 0
      %p72 = por %p70, %p71
      %p73 = scmp.ne.s32.totalorder %s61, %s62
      %p74 = scmp.eq.s32.totalorder %s19, 5
      %p75 = por %p73, %p74
      %p77 = scmp.ne.s32.totalorder %s62, %s76
      %p78 = scmp.eq.s32.totalorder %s19, 0
      %p79 = por %p77, %p78
      %s81 = sadd.s32 %s80, 1
      %p84 = scmp.eq.s32.totalorder %s13, 5
      %p85 = scmp.ne.s32.totalorder %s80, %s82
      %p86 = scmp.eq.s32.totalorder %s13, 0
      %p87 = por %p85, %p86
      %p88 = scmp.ne.s32.totalorder %s80, %s82
      %p89 = scmp.eq.s32.totalorder %s18, 5
      %p90 = por %p88, %p89
      %p91 = scmp.ne.s32.totalorder %s82, %s83
      %p92 = scmp.eq.s32.totalorder %s18, 0
      %p93 = por %p91, %p92
      %p94 = scmp.ne.s32.totalorder %s82, %s83
      %p95 = scmp.eq.s32.totalorder %s19, 5
      %p96 = por %p94, %p95
      %p98 = scmp.ne.s32.totalorder %s83, %s97
      %p99 = scmp.eq.s32.totalorder %s19, 0
      %p100 = por %p98, %p99
      %s102 = sadd.s32 %s101, 1
      %p105 = scmp.eq.s32.totalorder %s13, 5
      %p106 = scmp.ne.s32.totalorder %s101, %s103
      %p107 = scmp.eq.s32.totalorder %s13, 0
      %p108 = por %p106, %p107
      %p109 = scmp.ne.s32.totalorder %s101, %s103
      %p110 = scmp.eq.s32.totalorder %s18, 5
      %p111 = por %p109, %p110
      %p112 = scmp.ne.s32.totalorder %s103, %s104
      %p113 = scmp.eq.s32.totalorder %s18, 0
      %p114 = por %p112, %p113
      %p115 = scmp.ne.s32.totalorder %s103, %s104
      %p116 = scmp.eq.s32.totalorder %s19, 5
      %p117 = por %p115, %p116
      %p119 = scmp.ne.s32.totalorder %s104, %s118
      %p120 = scmp.eq.s32.totalorder %s19, 0
      %p121 = por %p119, %p120
      %s123 = sadd.s32 %s122, 1
      %p126 = scmp.eq.s32.totalorder %s13, 5
      %p127 = scmp.ne.s32.totalorder %s122, %s124
      %p128 = scmp.eq.s32.totalorder %s13, 0
      %p129 = por %p127, %p128
      %p130 = scmp.ne.s32.totalorder %s122, %s124
      %p131 = scmp.eq.s32.totalorder %s18, 5
      %p132 = por %p130, %p131
      %p133 = scmp.ne.s32.totalorder %s124, %s125
      %p134 = scmp.eq.s32.totalorder %s18, 0
      %p135 = por %p133, %p134
      %p136 = scmp.ne.s32.totalorder %s124, %s125
      %p137 = scmp.eq.s32.totalorder %s19, 5
      %p138 = por %p136, %p137
      %p140 = scmp.ne.s32.totalorder %s125, %s139
      %p141 = scmp.eq.s32.totalorder %s19, 0
      %p142 = por %p140, %p141
      %s143 = ssub.s32 %s21, %s28
      %p144 = scmp.eq.s32.totalorder %s143, 0
      %s146 = sadd.s32 %s145, 1
      %s147 = scalar_select %p144, %s145, %s146
      %p150 = pneg %p144
      %p151 = scmp.eq.s32.totalorder %s13, 5
      %p152 = por %p150, %p151
      %p153 = scmp.ne.s32.totalorder %s145, %s148
      %p154 = scmp.eq.s32.totalorder %s13, 0
      %p155 = por %p153, %p154
      %p156 = scmp.ne.s32.totalorder %s145, %s148
      %p157 = scmp.eq.s32.totalorder %s18, 5
      %p158 = por %p156, %p157
      %p159 = scmp.ne.s32.totalorder %s148, %s149
      %p160 = scmp.eq.s32.totalorder %s18, 0
      %p161 = por %p159, %p160
      %p162 = scmp.ne.s32.totalorder %s148, %s149
      %p163 = scmp.eq.s32.totalorder %s19, 5
      %p164 = por %p162, %p163
      %p166 = scmp.ne.s32.totalorder %s149, %s165
      %p167 = scmp.eq.s32.totalorder %s19, 0
      %p168 = por %p166, %p167
      %s169 = ssub.s32 %s21, %s28
      %p170 = scmp.eq.s32.totalorder %s169, 0
      %s172 = sadd.s32 %s171, 1
      %s173 = scalar_select %p170, %s171, %s172
      %p176 = pneg %p170
      %p177 = scmp.eq.s32.totalorder %s13, 5
      %p178 = por %p176, %p177
      %p179 = scmp.ne.s32.totalorder %s171, %s174
      %p180 = scmp.eq.s32.totalorder %s13, 0
      %p181 = por %p179, %p180
      %p182 = scmp.ne.s32.totalorder %s171, %s174
      %p183 = scmp.eq.s32.totalorder %s18, 5
      %p184 = por %p182, %p183
      %p185 = scmp.ne.s32.totalorder %s174, %s175
      %p186 = scmp.eq.s32.totalorder %s18, 0
      %p187 = por %p185, %p186
      %p188 = scmp.ne.s32.totalorder %s174, %s175
      %p189 = scmp.eq.s32.totalorder %s19, 5
      %p190 = por %p188, %p189
      %p192 = scmp.ne.s32.totalorder %s175, %s191
      %p193 = scmp.eq.s32.totalorder %s19, 0
      %p194 = por %p192, %p193
      %s195 = ssub.s32 %s20, %s32
      %s196 = ssub.s32 %s21, %s28
      %s197 = sor.u32 %s195, %s196
      %p198 = scmp.eq.s32.totalorder %s197, 0
      %s200 = sadd.s32 %s199, 1
      %s201 = scalar_select %p198, %s199, %s200
      %p204 = pneg %p198
      %p205 = scmp.eq.s32.totalorder %s13, 5
      %p206 = por %p204, %p205
      %p207 = scmp.ne.s32.totalorder %s199, %s202
      %p208 = scmp.eq.s32.totalorder %s13, 0
      %p209 = por %p207, %p208
      %p210 = scmp.ne.s32.totalorder %s199, %s202
      %p211 = scmp.eq.s32.totalorder %s18, 5
      %p212 = por %p210, %p211
      %p213 = scmp.ne.s32.totalorder %s202, %s203
      %p214 = scmp.eq.s32.totalorder %s18, 0
      %p215 = por %p213, %p214
      %p216 = scmp.ne.s32.totalorder %s202, %s203
      %p217 = scmp.eq.s32.totalorder %s19, 5
      %p218 = por %p216, %p217
      %p220 = scmp.ne.s32.totalorder %s203, %s219
      %p221 = scmp.eq.s32.totalorder %s19, 0
      %p222 = por %p220, %p221
      %p223 = scmp.le.s32.totalorder 1, %s13
      %p224 = scmp.lt.s32.totalorder %s13, 7
      %p225 = pnand %p223, %p224
      %p226 = pneg %p225
      // Predicated region
      $region9: #{vlm_pretraining_head.2} parent=5 // pred_check
        _
      $region10: #{vlm_pretraining_head.2} parent=5 // pred_check_branch
        %228 = sbr.rel (%p225) target = $region12
      $region11: #{vlm_pretraining_head.2} parent=5 // pred_region
        %s229 = ssub.s32 %s13, 1
        // Predicated region
        $region13: #{vlm_pretraining_head.2} parent=11 // pred_check
          %p230 = pneg %p72
        $region14: #{vlm_pretraining_head.2} parent=11 // pred_check_branch
          %232 = sbr.rel (%p230) target = $region16
        $region15: #{vlm_pretraining_head.2} parent=11 // pred_region
          _
        $region16: #{vlm_pretraining_head.2} parent=11 // pred_fallthru
          _
        // Predicated region
        $region17: #{vlm_pretraining_head.2} parent=11 // pred_check
          %p233 = pneg %p93
        $region18: #{vlm_pretraining_head.2} parent=11 // pred_check_branch
          %235 = sbr.rel (%p233) target = $region20
        $region19: #{vlm_pretraining_head.2} parent=11 // pred_region
          _
        $region20: #{vlm_pretraining_head.2} parent=11 // pred_fallthru
          _
        // Predicated region
        $region21: #{vlm_pretraining_head.2} parent=11 // pred_check
          %p236 = pneg %p114
        $region22: #{vlm_pretraining_head.2} parent=11 // pred_check_branch
          %238 = sbr.rel (%p236) target = $region24
        $region23: #{vlm_pretraining_head.2} parent=11 // pred_region
          _
        $region24: #{vlm_pretraining_head.2} parent=11 // pred_fallthru
          _
        // Predicated region
        $region25: #{vlm_pretraining_head.2} parent=11 // pred_check
          %p239 = pneg %p135
        $region26: #{vlm_pretraining_head.2} parent=11 // pred_check_branch
          %241 = sbr.rel (%p239) target = $region28
        $region27: #{vlm_pretraining_head.2} parent=11 // pred_region
          _
        $region28: #{vlm_pretraining_head.2} parent=11 // pred_fallthru
          _
      $region12: #{vlm_pretraining_head.2} parent=5 // pred_fallthru
        _
      %p242 = scmp.lt.s32.totalorder %s13, 6
      // Predicated region
      $region29: #{vlm_pretraining_head.2} parent=5 // pred_check
        %p243 = pneg %p242
      $region30: #{vlm_pretraining_head.2} parent=5 // pred_check_branch
        %245 = sbr.rel (%p243) target = $region32
      $region31: #{vlm_pretraining_head.2} parent=5 // pred_region
        // Predicated region
        $region33: #{vlm_pretraining_head.2} parent=31 // pred_check
          %p246 = pneg %p45
        $region34: #{vlm_pretraining_head.2} parent=31 // pred_check_branch
          %248 = sbr.rel (%p246) target = $region36
        $region35: #{vlm_pretraining_head.2} parent=31 // pred_region
          %s249 = smul.u32 2, %s20
          %p250 = scmp.lt.s32.totalorder %s249, 3
          %s251 = scalar_select %p250, %s249, 3
          %s252 = smul.addr %s251, 8
          %s253 = scalar_lea.vmem %s0, %s252
          %s254 = smul.u32 2, %s20
        $region36: #{vlm_pretraining_head.2} parent=31 // pred_fallthru
          _
        // Predicated region
        $region37: #{vlm_pretraining_head.2} parent=31 // pred_check
          %p255 = pneg %p155
        $region38: #{vlm_pretraining_head.2} parent=31 // pred_check_branch
          %257 = sbr.rel (%p255) target = $region40
        $region39: #{vlm_pretraining_head.2} parent=31 // pred_region
          %s258 = sand.u32 %s145, 1
          %s259 = sand.u32 %s145, 1
          %s260 = smul.addr %s259, 16
          %s261 = scalar_lea.vmem [#allocation3], %s260
          %s262 = smul.addr %s21, 4
          %s263 = scalar_lea.vmem %s5, %s262
          // Predicated region
          $region41: #{vlm_pretraining_head.2} parent=39 // pred_check
            _
          $region42: #{vlm_pretraining_head.2} parent=39 // pred_check_branch
            %265 = sbr.rel (0) target = $region44
          $region43: #{vlm_pretraining_head.2} parent=39 // pred_region
            // Predicated region
            $region45: #{vlm_pretraining_head.2} parent=43 // pred_check
              _
            $region46: #{vlm_pretraining_head.2} parent=43 // pred_check_branch
              %267 = sbr.rel target = $region48
            $region47: #{vlm_pretraining_head.2} parent=43 // pred_region
              // Predicated region
              $region60: #{vlm_pretraining_head.2} parent=47 // pred_check
                _
              $region61: #{vlm_pretraining_head.2} parent=47 // pred_check_branch
                %288 = sbr.rel (0) target = $region63
              $region62: #{vlm_pretraining_head.2} parent=47 // pred_region
                loop: start=0, step=1, limit=1
                $region64: #{vlm_pretraining_head.2} parent=62 // loop_pre_header
                  _
                $region65: #{vlm_pretraining_head.2} parent=62 // loop_header
                  %s290 = sphi 0, %s294
                  %p291 = scmp.ge.s32.totalorder %s290, 1
                  %s295 = sphi %s263, %s263
                  %s296 = sphi %s261, %s261
                $region66: #{vlm_pretraining_head.2} parent=62 // loop_header_branch
                  %293 = sbr.rel (%p291) target = $region70
                $region67: #{vlm_pretraining_head.2} parent=62 // loop_body
                  _
                $region68: #{vlm_pretraining_head.2} parent=62 // loop_footer
                  %s294 = sadd.s32 1, %s290
                $region69: #{vlm_pretraining_head.2} parent=62 // loop_footer_branch
                  %289 = sbr.rel target = $region65
                $region70: #{vlm_pretraining_head.2} parent=62 // loop_exit
                  _
                loop: start=0, step=1, limit=1
                $region71: #{vlm_pretraining_head.2} parent=62 // loop_pre_header
                  _
                $region72: #{vlm_pretraining_head.2} parent=62 // loop_header
                  %s299 = sphi 0, %s303
                  %p300 = scmp.ge.s32.totalorder %s299, 1
                  %s304 = sphi %s263, %s263
                  %s305 = sphi %s261, %s261
                $region73: #{vlm_pretraining_head.2} parent=62 // loop_header_branch
                  %302 = sbr.rel (%p300) target = $region77
                $region74: #{vlm_pretraining_head.2} parent=62 // loop_body
                  %v306 = vld [vmem:[%s304] sm:$0xf]
                  %307 = vst [vmem:[%s305] sm:$0xf] %v306
                  %v308 = vld [vmem:[%s304 + $0xc] sm:$0xf]
                  %309 = vst [vmem:[%s305 + $0x4] sm:$0xf] %v308
                  %v310 = vld [vmem:[%s304 + $0x18] sm:$0xf]
                  %311 = vst [vmem:[%s305 + $0x8] sm:$0xf] %v310
                  %v312 = vld [vmem:[%s304 + $0x24] sm:$0xf]
                  %313 = vst [vmem:[%s305 + $0xc] sm:$0xf] %v312
                $region75: #{vlm_pretraining_head.2} parent=62 // loop_footer
                  %s303 = sadd.s32 1, %s299
                $region76: #{vlm_pretraining_head.2} parent=62 // loop_footer_branch
                  %298 = sbr.rel target = $region72
                $region77: #{vlm_pretraining_head.2} parent=62 // loop_exit
                  _
              $region63: #{vlm_pretraining_head.2} parent=47 // pred_fallthru
                _
            $region48: #{vlm_pretraining_head.2} parent=43 // pred_fallthru
              _
            // Predicated region
            $region49: #{vlm_pretraining_head.2} parent=43 // pred_check
              _
            $region50: #{vlm_pretraining_head.2} parent=43 // pred_check_branch
              %269 = sbr.rel (0) target = $region52
            $region51: #{vlm_pretraining_head.2} parent=43 // pred_region
              loop: start=0, step=1, limit=1
              $region53: #{vlm_pretraining_head.2} parent=51 // loop_pre_header
                _
              $region54: #{vlm_pretraining_head.2} parent=51 // loop_header
                %s272 = sphi 0, %s276
                %p273 = scmp.ge.s32.totalorder %s272, 1
                %s277 = sphi %s263, %s263
                %s278 = sphi %s261, %s261
              $region55: #{vlm_pretraining_head.2} parent=51 // loop_header_branch
                %275 = sbr.rel (%p273) target = $region59
              $region56: #{vlm_pretraining_head.2} parent=51 // loop_body
                %v279 = vld [vmem:[%s277] sm:$0xf]
                %280 = vst [vmem:[%s278] sm:$0xf] %v279
                %v281 = vld [vmem:[%s277 + $0xc] sm:$0xf]
                %282 = vst [vmem:[%s278 + $0x4] sm:$0xf] %v281
                %v283 = vld [vmem:[%s277 + $0x18] sm:$0xf]
                %284 = vst [vmem:[%s278 + $0x8] sm:$0xf] %v283
                %v285 = vld [vmem:[%s277 + $0x24] sm:$0xf]
                %286 = vst [vmem:[%s278 + $0xc] sm:$0xf] %v285
              $region57: #{vlm_pretraining_head.2} parent=51 // loop_footer
                %s276 = sadd.s32 1, %s272
              $region58: #{vlm_pretraining_head.2} parent=51 // loop_footer_branch
                %271 = sbr.rel target = $region54
              $region59: #{vlm_pretraining_head.2} parent=51 // loop_exit
                _
            $region52: #{vlm_pretraining_head.2} parent=43 // pred_fallthru
              _
          $region44: #{vlm_pretraining_head.2} parent=39 // pred_fallthru
            _
          %314 = vnop
        $region40: #{vlm_pretraining_head.2} parent=31 // pred_fallthru
          _
        // Predicated region
        $region78: #{vlm_pretraining_head.2} parent=31 // pred_check
          %p315 = pneg %p181
        $region79: #{vlm_pretraining_head.2} parent=31 // pred_check_branch
          %317 = sbr.rel (%p315) target = $region81
        $region80: #{vlm_pretraining_head.2} parent=31 // pred_region
          %p318 = scmp.lt.s32.totalorder %s21, 2
          %s319 = scalar_select %p318, %s21, 2
          %s320 = scalar_lea.vmem %s6, %s319
        $region81: #{vlm_pretraining_head.2} parent=31 // pred_fallthru
          _
      $region32: #{vlm_pretraining_head.2} parent=5 // pred_fallthru
        _
      %p321 = scmp.le.s32.totalorder 1, %s13
      %p322 = scmp.lt.s32.totalorder %s13, 7
      %p323 = pnand %p321, %p322
      %p324 = pneg %p323
      // Predicated region
      $region82: #{vlm_pretraining_head.2} parent=5 // pred_check
        _
      $region83: #{vlm_pretraining_head.2} parent=5 // pred_check_branch
        %326 = sbr.rel (%p323) target = $region85
      $region84: #{vlm_pretraining_head.2} parent=5 // pred_region
        %s327 = ssub.s32 %s13, 1
        %s328 = sand.u32 %s148, 1
        %s329 = sand.u32 %s148, 1
        %s330 = smul.addr %s329, 16
        %s331 = scalar_lea.vmem [#allocation3], %s330
        // Predicated region
        $region86: #{vlm_pretraining_head.2} parent=84 // pred_check
          %p332 = pneg %p161
        $region87: #{vlm_pretraining_head.2} parent=84 // pred_check_branch
          %334 = sbr.rel (%p332) target = $region89
        $region88: #{vlm_pretraining_head.2} parent=84 // pred_region
          _
        $region89: #{vlm_pretraining_head.2} parent=84 // pred_fallthru
          _
        %s335 = smul.u32 2, %s22
        %p336 = scmp.lt.s32.totalorder %s335, 3
        %s337 = scalar_select %p336, %s335, 3
        %s338 = smul.addr %s337, 8
        %s339 = scalar_lea.vmem %s0, %s338
        %p340 = pneg %p51
        %p341 = pneg %p48
        %p342 = pneg %p72
        %p343 = pneg %p69
        %p344 = pneg %p93
        %p345 = pneg %p90
        %p346 = pneg %p114
        %p347 = pneg %p111
        %p348 = pneg %p135
        %p349 = pneg %p132
        %s350 = sand.u32 %s148, 1
        %s351 = sand.u32 %s148, 1
        %s352 = smul.addr %s351, 16
        %s353 = scalar_lea.vmem [#allocation3], %s352
        %p354 = pneg %p161
        %p355 = pneg %p158
        %p356 = scmp.lt.s32.totalorder %s23, 2
        %s357 = scalar_select %p356, %s23, 2
        %s358 = scalar_lea.vmem %s6, %s357
        %p359 = pneg %p187
        %p360 = pneg %p184
        %p361 = pneg %p215
        %p362 = pneg %p212
        %s363 = sand.u32 %s202, 1
        %s364 = sand.u32 %s202, 1
        %s365 = smul.addr %s364, 8
        %s366 = scalar_lea.vmem [#allocation4], %s365
        %s367 = smul.u32 2, %s22
        %p368 = scmp.lt.s32.totalorder %s367, 3
        %s369 = scalar_select %p368, %s367, 3
        %s370 = smul.addr %s369, 8
        %s371 = scalar_lea.vmem %s0, %s370
        %s372 = smul.u32 2, %s22
        %p373 = scmp.lt.s32.totalorder %s23, 2
        %s374 = scalar_select %p373, %s23, 2
        %s375 = scalar_lea.vmem %s6, %s374
        %s376 = smul.u32 2, %s22
        %p378 = scmp.eq.s32.totalorder %s23, 0
        // Predicated region
        $region90: #{vlm_pretraining_head.2} parent=84 // pred_check
          %p379 = pneg %p378
        $region91: #{vlm_pretraining_head.2} parent=84 // pred_check_branch
          %381 = sbr.rel (%p379) target = $region93
        $region92: #{vlm_pretraining_head.2} parent=84 // pred_region
          %v382 = vld [vmem:[%s371] sm:$0xff]
          %v383 = vld [vmem:[%s371 + $0x8] sm:$0xff]
          %v384 = vpack.c.bf16 %v383, %v382
          %v385 = vld [vmem:[%s1] sm:$0xf]
          %v386 = vld [vmem:[%s1 + $0x4] sm:$0xf]
          %v387 = vld [vmem:[%s1 + $0x8] sm:$0xf]
          %v388 = vld [vmem:[%s1 + $0xc] sm:$0xf]
          %v389 = vld [vmem:[%s2] sm:$0x1]
          %v391 = vlaneseq
          %v392 = vshrl.u32 %v391, 7
          %v393 = vsub.s32 0, %v392
          %v394 = vrot.slane %v389, %v393
          %v400 = vunpack.c.l.b16 %v385
          %v401 = vunpack.c.l.b16 %v386
          %v402 = vunpack.c.l.b16 %v387
          %v403 = vunpack.c.l.b16 %v388
          %v404 = vpack.c.b16 %v401, %v400
          %v405 = vpack.c.b16 %v403, %v402
          %vm408 = vcmask 261120
          %v410 = vsel %vm408, %v384, 0
          %412 = vmatprep.subr.bf16.mxu0 0
          %413 = vmatpush1.bf16.msra.mxu0 %v404
          %414 = vmatprep.subr.bf16.mxu0 0
          %415 = vmatpush1.bf16.msra.mxu0 %v405
          %416 = vmatprep.subr.bf16.mxu0 0
          %417 = vmatpush1.bf16.msra.mxu0 0
          %418 = vmatprep.subr.bf16.mxu0 0
          %419 = vmatpush1.bf16.msra.mxu0 0
          %420 = vmatprep.subr.bf16.mxu0 0
          %421 = vmatpush1.bf16.msra.mxu0 0
          %422 = vmatprep.subr.bf16.mxu0 0
          %423 = vmatpush1.bf16.msra.mxu0 0
          %424 = vmatprep.subr.bf16.mxu0 0
          %425 = vmatpush1.bf16.msra.mxu0 0
          %426 = vmatprep.subr.bf16.mxu0 0
          %427 = vmatpush1.bf16.msra.mxu0 0
          %428 = vmatprep.subr.bf16.mxu0 0
          %429 = vmatpush1.bf16.msra.mxu0 0
          %430 = vmatprep.subr.bf16.mxu0 0
          %431 = vmatpush1.bf16.msra.mxu0 0
          %432 = vmatprep.subr.bf16.mxu0 0
          %433 = vmatpush1.bf16.msra.mxu0 0
          %434 = vmatprep.subr.bf16.mxu0 0
          %435 = vmatpush1.bf16.msra.mxu0 0
          %436 = vmatprep.subr.bf16.mxu0 0
          %437 = vmatpush1.bf16.msra.mxu0 0
          %438 = vmatprep.subr.bf16.mxu0 0
          %439 = vmatpush1.bf16.msra.mxu0 0
          %440 = vmatprep.subr.bf16.mxu0 0
          %441 = vmatpush1.bf16.msra.mxu0 0
          %442 = vmatprep.subr.bf16.mxu0 0
          %443 = vmatpush1.bf16.msra.mxu0 0
          %444 = vmatprep.mubr.bf16.mxu0 0
          %445 = vmatmul.mubr.bf16.gmra.mrb[0].mxu0 %v410
          %v446 = vpop.f32.mrb[0].mxu0
          %v447 = vadd.f32 %v394, %v446
          %v448 = vpop.f32.mrb[0].mxu0
          %v449 = vpop.f32.mrb[0].mxu0
          %v450 = vadd.f32 %v394, %v449
          %v451 = vpop.f32.mrb[0].mxu0
          %452 = vdwg.mxu0
          %v453 = vmul.f32 %v447, 0.5
          %v454 = vmul.f32 %v450, 0.5
          %v455 = vmul.f32 %v447, 0.70710677
          %v456 = vmul.f32 %v450, 0.70710677
          %v457 = verf.f32.pop %v455
          %v458 = verf.f32.pop %v456
          %v459 = vadd.f32 %v457, 1.0
          %v460 = vadd.f32 %v458, 1.0
          %v461 = vmul.f32 %v453, %v459
          %v462 = vmul.f32 %v454, %v460
          %v463 = vsel %vm408, %v461, 0.0
          %464 = vadd.xlane.f32.xlu0 %v463
          %v465 = vpop.xlane.xlu0 %464
          %v466 = vsel %vm408, %v462, 0.0
          %467 = vadd.xlane.f32.xlu0 %v466
          %v468 = vpop.xlane.xlu0 %467
          %v469 = vrcp.pop 32.0
          %v470 = vmul.f32 %v465, %v469
          %v471 = vmul.f32 %v468, %v469
          %v472 = vsub.f32 %v461, %v470
          %v473 = vsub.f32 %v462, %v471
          %v474 = vmul.f32 %v472, %v472
          %v475 = vmul.f32 %v473, %v473
          %v476 = vsel %vm408, %v474, 0.0
          %477 = vadd.xlane.f32.xlu0 %v476
          %v478 = vpop.xlane.xlu0 %477
          %v479 = vsel %vm408, %v475, 0.0
          %480 = vadd.xlane.f32.xlu0 %v479
          %v481 = vpop.xlane.xlu0 %480
          %v482 = vmul.f32 %v478, %v469
          %v483 = vmul.f32 %v481, %v469
          %v484 = vadd.f32 %v482, 1e-12
          %v485 = vadd.f32 %v483, 1e-12
          %v486 = vrsqrt.pop %v484
          %v487 = vrsqrt.pop %v485
          %v488 = vmul.f32 %v472, %v486
          %v489 = vmul.f32 %v473, %v487
          %v490 = vld [vmem:[%s3] sm:$0x1]
          %v492 = vlaneseq
          %v493 = vshrl.u32 %v492, 7
          %v494 = vsub.s32 0, %v493
          %v495 = vrot.slane %v490, %v494
          %v497 = vmul.f32 %v488, %v495
          %v498 = vmul.f32 %v489, %v495
          %v499 = vld [vmem:[%s4] sm:$0x1]
          %v501 = vlaneseq
          %v502 = vshrl.u32 %v501, 7
          %v503 = vsub.s32 0, %v502
          %v504 = vrot.slane %v499, %v503
          %v506 = vadd.f32 %v497, %v504
          %v507 = vadd.f32 %v498, %v504
          %v508 = vpack.c.bf16 %v507, %v506
          %509 = vst.msk [vmem:[#allocation2] sm:$0xff] %vm408, %v508
        $region93: #{vlm_pretraining_head.2} parent=84 // pred_fallthru
          _
        %v510 = vld [vmem:[#allocation2] sm:$0xff]
        %v511 = vld [vmem:[%s331] sm:$0xf]
        %v512 = vld [vmem:[%s331 + $0x4] sm:$0xf]
        %v513 = vld [vmem:[%s331 + $0x8] sm:$0xf]
        %v514 = vld [vmem:[%s331 + $0xc] sm:$0xf]
        %v515 = vld [vmem:[%s375] sm:$0x1]
        %v517 = vlaneseq
        %v518 = vshrl.u32 %v517, 7
        %v519 = vsub.s32 0, %v518
        %v520 = vrot.slane %v515, %v519
        %v526 = vunpack.c.l.b16 %v511
        %v527 = vunpack.c.l.b16 %v512
        %v528 = vunpack.c.l.b16 %v513
        %v529 = vunpack.c.l.b16 %v514
        %v530 = vpack.c.b16 %v527, %v526
        %v531 = vpack.c.b16 %v529, %v528
        %vm534 = vcmask 261120
        %v536 = vsel %vm534, %v510, 0
        %538 = vmatprep.subr.bf16.mxu0 0
        %539 = vmatpush1.bf16.msra.mxu0 %v530
        %540 = vmatprep.subr.bf16.mxu0 0
        %541 = vmatpush1.bf16.msra.mxu0 %v531
        %542 = vmatprep.subr.bf16.mxu0 0
        %543 = vmatpush1.bf16.msra.mxu0 0
        %544 = vmatprep.subr.bf16.mxu0 0
        %545 = vmatpush1.bf16.msra.mxu0 0
        %546 = vmatprep.subr.bf16.mxu0 0
        %547 = vmatpush1.bf16.msra.mxu0 0
        %548 = vmatprep.subr.bf16.mxu0 0
        %549 = vmatpush1.bf16.msra.mxu0 0
        %550 = vmatprep.subr.bf16.mxu0 0
        %551 = vmatpush1.bf16.msra.mxu0 0
        %552 = vmatprep.subr.bf16.mxu0 0
        %553 = vmatpush1.bf16.msra.mxu0 0
        %554 = vmatprep.subr.bf16.mxu0 0
        %555 = vmatpush1.bf16.msra.mxu0 0
        %556 = vmatprep.subr.bf16.mxu0 0
        %557 = vmatpush1.bf16.msra.mxu0 0
        %558 = vmatprep.subr.bf16.mxu0 0
        %559 = vmatpush1.bf16.msra.mxu0 0
        %560 = vmatprep.subr.bf16.mxu0 0
        %561 = vmatpush1.bf16.msra.mxu0 0
        %562 = vmatprep.subr.bf16.mxu0 0
        %563 = vmatpush1.bf16.msra.mxu0 0
        %564 = vmatprep.subr.bf16.mxu0 0
        %565 = vmatpush1.bf16.msra.mxu0 0
        %566 = vmatprep.subr.bf16.mxu0 0
        %567 = vmatpush1.bf16.msra.mxu0 0
        %568 = vmatprep.subr.bf16.mxu0 0
        %569 = vmatpush1.bf16.msra.mxu0 0
        %570 = vmatprep.mubr.bf16.mxu0 0
        %571 = vmatmul.mubr.bf16.gmra.mrb[0].mxu0 %v536
        %v572 = vpop.f32.mrb[0].mxu0
        %v573 = vadd.f32 %v520, %v572
        %v574 = vpop.f32.mrb[0].mxu0
        %v575 = vpop.f32.mrb[0].mxu0
        %v576 = vadd.f32 %v520, %v575
        %v577 = vpop.f32.mrb[0].mxu0
        %578 = vdwg.mxu0
        %v579 = vpack.c.bf16 %v576, %v573
        %v581 = vunpack.c.l.b16 %v579
        %v582 = vunpack.c.h.b16 %v579
        %v583 = vpack.c.b16 %v581, %v581
        %v584 = vpack.c.b16 %v582, %v582
        %587 = vst [vmem:[%s366] sm:$0xf] %v583
        %588 = vst [vmem:[%s366 + $0x4] sm:$0xf] %v584
        %s589 = sand.u32 %s202, 1
        %s590 = sand.u32 %s202, 1
        %s591 = smul.addr %s590, 8
        %s592 = scalar_lea.vmem [#allocation4], %s591
        // Predicated region
        $region94: #{vlm_pretraining_head.2} parent=84 // pred_check
          %p593 = pneg %p212
        $region95: #{vlm_pretraining_head.2} parent=84 // pred_check_branch
          %595 = sbr.rel (%p593) target = $region97
        $region96: #{vlm_pretraining_head.2} parent=84 // pred_region
          %s596 = smul.u32 2, %s22
          %s597 = smul.addr %s596, 3
          %s598 = sadd.s32 %s23, %s597
          %s599 = smul.addr %s598, 4
          %s600 = scalar_lea.vmem %s7, %s599
          // Predicated region
          $region98: #{vlm_pretraining_head.2} parent=96 // pred_check
            _
          $region99: #{vlm_pretraining_head.2} parent=96 // pred_check_branch
            %602 = sbr.rel (0) target = $region101
          $region100: #{vlm_pretraining_head.2} parent=96 // pred_region
            // Predicated region
            $region102: #{vlm_pretraining_head.2} parent=100 // pred_check
              _
            $region103: #{vlm_pretraining_head.2} parent=100 // pred_check_branch
              %604 = sbr.rel target = $region105
            $region104: #{vlm_pretraining_head.2} parent=100 // pred_region
              // Predicated region
              $region117: #{vlm_pretraining_head.2} parent=104 // pred_check
                _
              $region118: #{vlm_pretraining_head.2} parent=104 // pred_check_branch
                %621 = sbr.rel (0) target = $region120
              $region119: #{vlm_pretraining_head.2} parent=104 // pred_region
                loop: start=0, step=1, limit=1
                $region121: #{vlm_pretraining_head.2} parent=119 // loop_pre_header
                  _
                $region122: #{vlm_pretraining_head.2} parent=119 // loop_header
                  %s623 = sphi 0, %s627
                  %p624 = scmp.ge.s32.totalorder %s623, 1
                  %s628 = sphi %s592, %s592
                  %s629 = sphi %s600, %s600
                $region123: #{vlm_pretraining_head.2} parent=119 // loop_header_branch
                  %626 = sbr.rel (%p624) target = $region127
                $region124: #{vlm_pretraining_head.2} parent=119 // loop_body
                  _
                $region125: #{vlm_pretraining_head.2} parent=119 // loop_footer
                  %s627 = sadd.s32 1, %s623
                $region126: #{vlm_pretraining_head.2} parent=119 // loop_footer_branch
                  %622 = sbr.rel target = $region122
                $region127: #{vlm_pretraining_head.2} parent=119 // loop_exit
                  _
                loop: start=0, step=1, limit=1
                $region128: #{vlm_pretraining_head.2} parent=119 // loop_pre_header
                  _
                $region129: #{vlm_pretraining_head.2} parent=119 // loop_header
                  %s632 = sphi 0, %s636
                  %p633 = scmp.ge.s32.totalorder %s632, 1
                  %s637 = sphi %s592, %s592
                  %s638 = sphi %s600, %s600
                $region130: #{vlm_pretraining_head.2} parent=119 // loop_header_branch
                  %635 = sbr.rel (%p633) target = $region134
                $region131: #{vlm_pretraining_head.2} parent=119 // loop_body
                  %v639 = vld [vmem:[%s637] sm:$0xf]
                  %640 = vst [vmem:[%s638] sm:$0xf] %v639
                  %v641 = vld [vmem:[%s637 + $0x4] sm:$0xf]
                  %642 = vst [vmem:[%s638 + $0xc] sm:$0xf] %v641
                $region132: #{vlm_pretraining_head.2} parent=119 // loop_footer
                  %s636 = sadd.s32 1, %s632
                $region133: #{vlm_pretraining_head.2} parent=119 // loop_footer_branch
                  %631 = sbr.rel target = $region129
                $region134: #{vlm_pretraining_head.2} parent=119 // loop_exit
                  _
              $region120: #{vlm_pretraining_head.2} parent=104 // pred_fallthru
                _
            $region105: #{vlm_pretraining_head.2} parent=100 // pred_fallthru
              _
            // Predicated region
            $region106: #{vlm_pretraining_head.2} parent=100 // pred_check
              _
            $region107: #{vlm_pretraining_head.2} parent=100 // pred_check_branch
              %606 = sbr.rel (0) target = $region109
            $region108: #{vlm_pretraining_head.2} parent=100 // pred_region
              loop: start=0, step=1, limit=1
              $region110: #{vlm_pretraining_head.2} parent=108 // loop_pre_header
                _
              $region111: #{vlm_pretraining_head.2} parent=108 // loop_header
                %s609 = sphi 0, %s613
                %p610 = scmp.ge.s32.totalorder %s609, 1
                %s614 = sphi %s592, %s592
                %s615 = sphi %s600, %s600
              $region112: #{vlm_pretraining_head.2} parent=108 // loop_header_branch
                %612 = sbr.rel (%p610) target = $region116
              $region113: #{vlm_pretraining_head.2} parent=108 // loop_body
                %v616 = vld [vmem:[%s614] sm:$0xf]
                %617 = vst [vmem:[%s615] sm:$0xf] %v616
                %v618 = vld [vmem:[%s614 + $0x4] sm:$0xf]
                %619 = vst [vmem:[%s615 + $0xc] sm:$0xf] %v618
              $region114: #{vlm_pretraining_head.2} parent=108 // loop_footer
                %s613 = sadd.s32 1, %s609
              $region115: #{vlm_pretraining_head.2} parent=108 // loop_footer_branch
                %608 = sbr.rel target = $region111
              $region116: #{vlm_pretraining_head.2} parent=108 // loop_exit
                _
            $region109: #{vlm_pretraining_head.2} parent=100 // pred_fallthru
              _
          $region101: #{vlm_pretraining_head.2} parent=96 // pred_fallthru
            _
          %643 = vnop
        $region97: #{vlm_pretraining_head.2} parent=84 // pred_fallthru
          _
      $region85: #{vlm_pretraining_head.2} parent=5 // pred_fallthru
        _
      %p644 = scmp.le.s32.totalorder 2, %s13
      // Predicated region
      $region135: #{vlm_pretraining_head.2} parent=5 // pred_check
        %p645 = pneg %p644
      $region136: #{vlm_pretraining_head.2} parent=5 // pred_check_branch
        %647 = sbr.rel (%p645) target = $region138
      $region137: #{vlm_pretraining_head.2} parent=5 // pred_region
        %s648 = ssub.s32 %s13, 2
        // Predicated region
        $region139: #{vlm_pretraining_head.2} parent=137 // pred_check
          %p649 = pneg %p218
        $region140: #{vlm_pretraining_head.2} parent=137 // pred_check_branch
          %651 = sbr.rel (%p649) target = $region142
        $region141: #{vlm_pretraining_head.2} parent=137 // pred_region
          %s652 = sand.u32 %s203, 1
          %s653 = sand.u32 %s203, 1
          %s654 = smul.addr %s653, 8
          %s655 = scalar_lea.vmem [#allocation4], %s654
        $region142: #{vlm_pretraining_head.2} parent=137 // pred_fallthru
          _
      $region138: #{vlm_pretraining_head.2} parent=5 // pred_fallthru
        _
    $region6: #{vlm_pretraining_head.2} parent=1 // loop_footer
      %s17 = sadd.s32 1, %s13
    $region7: #{vlm_pretraining_head.2} parent=1 // loop_footer_branch
      %12 = sbr.rel target = $region3
    $region8: #{vlm_pretraining_head.2} parent=1 // loop_exit
      _

</llo_original>
